<compile_context>
chip_gen: v7x
topology: tpu7x:2x2x1
jax: 0.10.0
libtpu: 0.0.40
codegen_flags: <defaults>
</compile_context>

<pallas_src>
import functools

import jax
import jax.numpy as jnp
from jax.experimental import pallas as pl
from jax.experimental.pallas import tpu as pltpu

NUM_HEADS = 2


def _vmem_cap_bytes():
    """Generation-aware scoped-VMEM budget (v5e/v6e: 128 MiB, v7x: 64 MiB per TC)."""
    try:
        cap = int(getattr(pltpu.get_tpu_info(), "vmem_capacity_bytes", 64 * 2**20))
    except Exception:  # conservative fallback: smallest production VMEM (v7x per-TC)
        cap = 64 * 2**20
    return max(32 * 2**20, min(cap - 16 * 2**20, 110 * 2**20))


_VMEM_CAP = _vmem_cap_bytes()


def _gat_head(a_bf, ones_col, z_ext, bias):
    """One DGL GATConv head: edge-softmax attention, aggregation, +bias, relu.

    z_ext = [z | el | er] comes straight out of a single MXU pass (el/er were
    folded into the feature matmul via extended weights in the wrapper).
    """
    hdim = z_ext.shape[1] - 2
    z = z_ext[:, :hdim]                      # (N,H) f32
    el = z_ext[:, hdim:hdim + 1]             # (N,1) src scores
    er = z_ext[:, hdim + 1:hdim + 2]         # (N,1) dst scores

    # Algebraic row-max: leaky_relu is monotone, so the (unmasked) row max of
    # e[dst,src] = leaky(er[dst]+el[src]) is leaky(er + max(el)); softmax is
    # shift-invariant so the unmasked max is a valid shift (no (N,N) reduction).
    el_max = jnp.max(el, axis=0, keepdims=True)            # (1,1)
    s = er + el_max
    m = jnp.maximum(s, 0.2 * s)                            # (N,1) f32 shift

    # bf16 elementwise attention pipeline; mask by multiplying with the binary
    # adjacency instead of a select.
    e = er.astype(jnp.bfloat16) + el.T.astype(jnp.bfloat16)   # (N,N) logits e[dst,src]
    e = jnp.maximum(e, 0.2 * e)                                # leaky_relu(0.2), one vmax
    p = jnp.exp(e - m.astype(jnp.bfloat16)) * a_bf             # masked numerator, bf16 only

    # Fused numerator + denominator: ONE MXU pass of p against [z | 1].
    zc = jnp.concatenate([z.astype(jnp.bfloat16), ones_col], axis=1)    # (N, H+1)
    res = jnp.dot(p, zc, preferred_element_type=jnp.float32)            # (N, H+1)
    num = res[:, :hdim]
    den = res[:, hdim:hdim + 1]
    # clamp: a 0-in-degree node gets output 0 (no incoming attention mass).
    inv = pl.reciprocal(jnp.maximum(den, 1e-12), approx=True)
    return jnp.maximum(num * inv + bias, 0.0)                 # + bias, relu


def _graph_conv(a_bf, h, rsq_in, rsq_out, w_bf, bias):
    """DGL GraphConv, norm='both':  D_in^{-1/2} A D_out^{-1/2} h W + b (degrees clamped)."""
    hs = (h * rsq_out).astype(jnp.bfloat16)
    agg = jnp.dot(a_bf, hs, preferred_element_type=jnp.float32) * rsq_in
    return jnp.dot(agg.astype(jnp.bfloat16), w_bf,
                   preferred_element_type=jnp.float32) + bias


def bem_kernel(a_ref, x_ref, invdeg_ref, rsq_in_ref, rsq_out_ref,
               wa_ref, ba_ref, wb_ref, bb_ref,
               wfuse_ref, bfuse_ref, pe_ref,
               we_ref, be_ref, wo_ref, bo_ref,
               out_ref):
    a = a_ref[...]                                  # (N,N) bf16, A[dst,src]
    n = a.shape[0]
    ones_col = jnp.ones((n, 1), jnp.bfloat16)       # hoisted rowsum-fusion column

    inv_deg = invdeg_ref[...]                       # (N,1) 1/max(deg_in,1)
    rsq_in = rsq_in_ref[...]                        # (N,1) rsqrt(max(deg_in,1))
    rsq_out = rsq_out_ref[...]                      # (N,1) rsqrt(max(deg_out,1))

    hdim = we_ref.shape[0]
    he = hdim + 2                                   # extended head width [z | el | er]

    # ---- alpha GATConv: one MXU pass yields z/el/er for both heads ----
    za = jnp.dot(x_ref[...], wa_ref[...], preferred_element_type=jnp.float32)   # (N, 2*he)
    ba = ba_ref[...]
    a0 = _gat_head(a, ones_col, za[:, :he], ba[:, :hdim])
    a1 = _gat_head(a, ones_col, za[:, he:], ba[:, hdim:])
    a_cat = jnp.concatenate([a0, a1], axis=1)       # (N, 2H) == .flatten(1)

    # ---- beta GATConv on the flattened alpha output (single merged dot) ----
    zb = jnp.dot(a_cat.astype(jnp.bfloat16), wb_ref[...],
                 preferred_element_type=jnp.float32)                            # (N, 2*he)
    bb = bb_ref[...]
    b0 = _gat_head(a, ones_col, zb[:, :he], bb[:, :hdim])
    b1 = _gat_head(a, ones_col, zb[:, he:], bb[:, hdim:])
    b_cat = jnp.concatenate([b0, b1], axis=1)       # (N, 2H)

    # ---- gamma SAGEConv('mean') + phase_fusion folded into one 6H-wide matmul ----
    # (gamma_h only feeds the fusion Linear, so Wss/Wsn were pre-multiplied by the
    #  fusion weight's gamma block in the wrapper.)
    nb = jnp.dot(a, b_cat.astype(jnp.bfloat16),
                 preferred_element_type=jnp.float32) * inv_deg                  # mean agg
    feat = jnp.concatenate([a_cat, b_cat, nb], axis=1).astype(jnp.bfloat16)     # (N, 6H)
    h = jnp.dot(feat, wfuse_ref[...], preferred_element_type=jnp.float32) + bfuse_ref[...]
    h = jnp.maximum(h, 0.0)

    # ---- + phase embedding (gathered outside); Dropout(0.1) in eval == identity ----
    h = h + pe_ref[...]

    # ---- embedding GraphConv + relu ----
    h = jnp.maximum(_graph_conv(a, h, rsq_in, rsq_out, we_ref[...], be_ref[...]), 0.0)

    # ---- output GraphConv (lane-padded, lane-dense store) ----
    out_ref[...] = _graph_conv(a, h, rsq_in, rsq_out, wo_ref[...], bo_ref[...])


def _gat_ext_weight(W, al, ar):
    """Per-head extended GAT weight [W_h | W_h@al_h | W_h@ar_h], heads lane-packed."""
    hdim = al.shape[1]
    cols = []
    for hd in range(NUM_HEADS):
        Wh = W[:, hd * hdim:(hd + 1) * hdim]
        cols += [Wh, Wh @ al[hd].reshape(hdim, 1), Wh @ ar[hd].reshape(hdim, 1)]
    return jnp.concatenate(cols, axis=1)


@functools.partial(jax.jit, static_argnums=(4,))
def bem_graph_embedding(A, x, phase_ids, params, out_feats):
    N, F = x.shape
    H = params["We"].shape[0]
    out_pad = ((out_feats + 127) // 128) * 128        # lane-dense output width

    # --- glue computed once in plain JAX (depends only on A / phase ids) ---
    phase_emb = jnp.take(params["phase_table"], phase_ids, axis=0)            # (N,H)
    deg_in = jnp.maximum(jnp.sum(A, axis=1, keepdims=True), 1.0)              # (N,1)
    deg_out = jnp.maximum(jnp.sum(A, axis=0), 1.0).reshape(N, 1)              # (N,1)
    inv_deg_in = 1.0 / deg_in
    rsq_in = jax.lax.rsqrt(deg_in)
    rsq_out = jax.lax.rsqrt(deg_out)
    a_bf = A.astype(jnp.bfloat16)                                             # binary -> exact
    x_bf = x.astype(jnp.bfloat16)

    # --- static weight re-packing (tiny f32 matmuls in the wrapper, then bf16) ---
    bf16 = jnp.bfloat16
    wa_ext = _gat_ext_weight(params["Wa"], params["ala"], params["ara"]).astype(bf16)
    wb_ext = _gat_ext_weight(params["Wb"], params["alb"], params["arb"]).astype(bf16)

    # fold the SAGE layer through the fusion Linear (gamma_h only feeds the fusion):
    #   concat([a,b,g]) @ Wf == a@Wf_a + b@(Wf_b + Wss@Wf_g) + mean_agg(b)@(Wsn@Wf_g)
    #                            + (bs@Wf_g + bf)
    Wf = params["Wf"]
    Wf_a, Wf_b, Wf_g = Wf[:2 * H], Wf[2 * H:4 * H], Wf[4 * H:]
    w_fuse = jnp.concatenate(
        [Wf_a, Wf_b + params["Wss"] @ Wf_g, params["Wsn"] @ Wf_g], axis=0).astype(bf16)
    b_fuse = params["bf"] + params["bs"] @ Wf_g

    wo_p = jnp.zeros((H, out_pad), jnp.float32).at[:, :out_feats].set(params["Wo"]).astype(bf16)
    bo_p = jnp.zeros((1, out_pad), jnp.float32).at[:, :out_feats].set(params["bo"])

    args = (
        a_bf, x_bf, inv_deg_in, rsq_in, rsq_out,
        wa_ext, params["ba"],
        wb_ext, params["bb"],
        w_fuse, b_fuse,
        phase_emb,
        params["We"].astype(bf16), params["be"],
        wo_p, bo_p,
    )

    # advisory cost / VMEM hints
    he = H + 2
    flops = int(2 * N * N * (8 * H + 4)
                + 2 * N * (2 * he * (F + 2 * H) + 6 * H * H + H * H + H * out_pad))
    transcendentals = int(4 * N * N)
    bytes_acc = int(2 * N * N + 4 * N * (F + 2 * H + out_pad + 3)
                    + 2 * (2 * he * (F + 2 * H) + 7 * H * H + H * out_pad))
    vmem_limit = int(min(_VMEM_CAP, max(32 * 2**20, 12 * N * N + (8 << 20))))

    out = pl.pallas_call(
        bem_kernel,
        out_shape=jax.ShapeDtypeStruct((N, out_pad), jnp.float32),
        in_specs=[pl.BlockSpec(memory_space=pltpu.MemorySpace.VMEM)] * len(args),
        out_specs=pl.BlockSpec(memory_space=pltpu.MemorySpace.VMEM),
        compiler_params=pltpu.CompilerParams(vmem_limit_bytes=vmem_limit),
        cost_estimate=pl.CostEstimate(flops=flops, transcendentals=transcendentals,
                                      bytes_accessed=bytes_acc),
    )(*args)
    return out[:, :out_feats]


def make_params(key, in_feats, hidden, out_feats, num_phases=3):
    keys = jax.random.split(key, 20)
    g = lambda k, shape: (0.1 * jax.random.normal(k, shape)).astype(jnp.float32)
    return {
        # alpha GATConv: in_feats -> hidden, 2 heads
        "Wa": g(keys[0], (in_feats, NUM_HEADS * hidden)),
        "ala": g(keys[1], (NUM_HEADS, hidden)),
        "ara": g(keys[2], (NUM_HEADS, hidden)),
        "ba": g(keys[3], (1, NUM_HEADS * hidden)),
        # beta GATConv: 2*hidden -> hidden, 2 heads
        "Wb": g(keys[4], (2 * hidden, NUM_HEADS * hidden)),
        "alb": g(keys[5], (NUM_HEADS, hidden)),
        "arb": g(keys[6], (NUM_HEADS, hidden)),
        "bb": g(keys[7], (1, NUM_HEADS * hidden)),
        # gamma SAGEConv: 2*hidden -> hidden
        "Wss": g(keys[8], (2 * hidden, hidden)),
        "Wsn": g(keys[9], (2 * hidden, hidden)),
        "bs": g(keys[10], (1, hidden)),
        # phase_fusion Linear: (2H + 2H + H) -> hidden   (see NOTE at top)
        "Wf": g(keys[11], (5 * hidden, hidden)),
        "bf": g(keys[12], (1, hidden)),
        # phase embedding table
        "phase_table": g(keys[13], (num_phases, hidden)),
        # embedding_layer GraphConv: hidden -> hidden
        "We": g(keys[14], (hidden, hidden)),
        "be": g(keys[15], (1, hidden)),
        # output_layer GraphConv: hidden -> out_feats
        "Wo": g(keys[16], (hidden, out_feats)),
        "bo": g(keys[17], (1, out_feats)),
    }


def _reference(A, x, phase_ids, params):
    """Pure-JAX f32 reference matching the PyTorch/DGL forward (eval mode)."""
    def gat(h, W, al, ar, b):
        z = h @ W
        H = al.shape[1]
        outs = []
        for hd in range(NUM_HEADS):
            zh = z[:, hd * H:(hd + 1) * H]
            el = jnp.sum(zh * al[hd], axis=1, keepdims=True)
            er = jnp.sum(zh * ar[hd], axis=1, keepdims=True)
            e = er + el.T
            e = jnp.where(e > 0, e, 0.2 * e)
            e = jnp.where(A > 0, e, -1e30)
            e = e - jnp.max(e, axis=1, keepdims=True)
            p = jnp.exp(e)
            outs.append((p / jnp.sum(p, axis=1, keepdims=True)) @ zh)
        return jnp.maximum(jnp.concatenate(outs, axis=1) + b, 0.0)

    def gconv(h, W, b):
        deg_out = jnp.maximum(jnp.sum(A, axis=0, keepdims=True), 1.0)
        deg_in = jnp.maximum(jnp.sum(A, axis=1, keepdims=True), 1.0)
        return ((A @ (h / jnp.sqrt(deg_out.T))) / jnp.sqrt(deg_in)) @ W + b

    ah = gat(x, params["Wa"], params["ala"], params["ara"], params["ba"])
    bh = gat(ah, params["Wb"], params["alb"], params["arb"], params["bb"])
    deg_in = jnp.maximum(jnp.sum(A, axis=1, keepdims=True), 1.0)
    gh = bh @ params["Wss"] + ((A @ bh) / deg_in) @ params["Wsn"] + params["bs"]
    fused = jnp.concatenate([ah, bh, gh], axis=1)
    h = jnp.maximum(fused @ params["Wf"] + params["bf"], 0.0)
    h = h + jnp.take(params["phase_table"], phase_ids, axis=0)
    h = jnp.maximum(gconv(h, params["We"], params["be"]), 0.0)
    return gconv(h, params["Wo"], params["bo"])


if __name__ == "__main__":
    N, in_feats, hidden, out_feats = 16, 8, 16, 8

    key = jax.random.PRNGKey(0)
    k_feat, k_param = jax.random.split(key)

    # Deterministic small graph: self-loops + two ring edges per node (A[dst, src]).
    A = jnp.zeros((N, N), jnp.float32)
    idx = jnp.arange(N)
    A = A.at[idx, idx].set(1.0)
    A = A.at[idx, (idx + 1) % N].set(1.0)
    A = A.at[idx, (idx + 3) % N].set(1.0)

    x = jax.random.normal(k_feat, (N, in_feats), jnp.float32)
    phase_ids = jnp.arange(N, dtype=jnp.int32) % 3          # g.ndata['phase']

    params = make_params(k_param, in_feats, hidden, out_feats)

    emb = bem_graph_embedding(A, x, phase_ids, params, out_feats)
    emb = jax.block_until_ready(emb)
    assert emb.shape == (N, out_feats)
    assert bool(jnp.all(jnp.isfinite(emb)))

    # bf16 attention/elementwise/matmuls + approx reciprocal => loose but meaningful tolerance.
    ref = _reference(A, x, phase_ids, params)
    assert bool(jnp.allclose(emb, ref, rtol=5e-2, atol=5e-2)), \
        f"max abs err {float(jnp.max(jnp.abs(emb - ref)))}"

    print("KERNEL_OK")
</pallas_src>

<mosaic_0001>
module attributes {stable_mosaic.version = 11 : i64} {
  func.func @bem_kernel(%arg0: memref<16x16xbf16, #tpu.memory_space<vmem>>, %arg1: memref<16x8xbf16, #tpu.memory_space<vmem>>, %arg2: memref<16x1xf32, #tpu.memory_space<vmem>>, %arg3: memref<16x1xf32, #tpu.memory_space<vmem>>, %arg4: memref<16x1xf32, #tpu.memory_space<vmem>>, %arg5: memref<8x36xbf16, #tpu.memory_space<vmem>>, %arg6: memref<1x32xf32, #tpu.memory_space<vmem>>, %arg7: memref<32x36xbf16, #tpu.memory_space<vmem>>, %arg8: memref<1x32xf32, #tpu.memory_space<vmem>>, %arg9: memref<96x16xbf16, #tpu.memory_space<vmem>>, %arg10: memref<1x16xf32, #tpu.memory_space<vmem>>, %arg11: memref<16x16xf32, #tpu.memory_space<vmem>>, %arg12: memref<16x16xbf16, #tpu.memory_space<vmem>>, %arg13: memref<1x16xf32, #tpu.memory_space<vmem>>, %arg14: memref<16x128xbf16, #tpu.memory_space<vmem>>, %arg15: memref<1x128xf32, #tpu.memory_space<vmem>>, %arg16: memref<16x128xf32, #tpu.memory_space<vmem>>) attributes {dimension_semantics = [], scalar_prefetch = 0 : i64, scratch_operands = 0 : i64, tpu.core_type = #tpu.core_type<tc>} {
    %c0 = arith.constant 0 : index
    %c0_0 = arith.constant 0 : index
    %0 = vector.load %arg0[%c0, %c0_0] : memref<16x16xbf16, #tpu.memory_space<vmem>>, vector<16x16xbf16>
    %cst = arith.constant 1.000000e+00 : bf16
    %1 = vector.broadcast %cst : bf16 to vector<16x1xbf16>
    %c0_1 = arith.constant 0 : index
    %c0_2 = arith.constant 0 : index
    %2 = vector.load %arg2[%c0_1, %c0_2] : memref<16x1xf32, #tpu.memory_space<vmem>>, vector<16x1xf32>
    %c0_3 = arith.constant 0 : index
    %c0_4 = arith.constant 0 : index
    %3 = vector.load %arg3[%c0_3, %c0_4] : memref<16x1xf32, #tpu.memory_space<vmem>>, vector<16x1xf32>
    %c0_5 = arith.constant 0 : index
    %c0_6 = arith.constant 0 : index
    %4 = vector.load %arg4[%c0_5, %c0_6] : memref<16x1xf32, #tpu.memory_space<vmem>>, vector<16x1xf32>
    %c0_7 = arith.constant 0 : index
    %c0_8 = arith.constant 0 : index
    %5 = vector.load %arg1[%c0_7, %c0_8] : memref<16x8xbf16, #tpu.memory_space<vmem>>, vector<16x8xbf16>
    %c0_9 = arith.constant 0 : index
    %c0_10 = arith.constant 0 : index
    %6 = vector.load %arg5[%c0_9, %c0_10] : memref<8x36xbf16, #tpu.memory_space<vmem>>, vector<8x36xbf16>
    %cst_11 = arith.constant dense<0.000000e+00> : vector<16x36xf32>
    %7 = tpu.matmul %5, %6, %cst_11 {dimension_numbers = #tpu.dot_dimension_numbers<[1], [0], [0], [1], [0, 0, 1, 1], [], []>} : vector<16x8xbf16>, vector<8x36xbf16>, vector<16x36xf32> -> vector<16x36xf32>
    %c0_12 = arith.constant 0 : index
    %c0_13 = arith.constant 0 : index
    %8 = vector.load %arg6[%c0_12, %c0_13] : memref<1x32xf32, #tpu.memory_space<vmem>>, vector<1x32xf32>
    %9 = vector.extract_strided_slice %7 {offsets = [0, 0], sizes = [16, 18], strides = [1, 1]} : vector<16x36xf32> to vector<16x18xf32>
    %10 = vector.extract_strided_slice %8 {offsets = [0, 0], sizes = [1, 16], strides = [1, 1]} : vector<1x32xf32> to vector<1x16xf32>
    %11 = vector.extract_strided_slice %9 {offsets = [0, 0], sizes = [16, 16], strides = [1, 1]} : vector<16x18xf32> to vector<16x16xf32>
    %12 = vector.extract_strided_slice %9 {offsets = [0, 16], sizes = [16, 1], strides = [1, 1]} : vector<16x18xf32> to vector<16x1xf32>
    %13 = vector.extract_strided_slice %9 {offsets = [0, 17], sizes = [16, 1], strides = [1, 1]} : vector<16x18xf32> to vector<16x1xf32>
    %cst_14 = arith.constant dense<0xFF800000> : vector<1xf32>
    %14 = vector.multi_reduction <maximumf>, %12, %cst_14 [0] : vector<16x1xf32> to vector<1xf32>
    %15 = vector.shape_cast %14 : vector<1xf32> to vector<1x1xf32>
    %16 = vector.broadcast %15 : vector<1x1xf32> to vector<16x1xf32>
    %17 = arith.addf %13, %16 : vector<16x1xf32>
    %cst_15 = arith.constant 2.000000e-01 : f32
    %18 = vector.broadcast %cst_15 : f32 to vector<16x1xf32>
    %19 = arith.mulf %18, %17 : vector<16x1xf32>
    %20 = arith.maximumf %17, %19 : vector<16x1xf32>
    %21 = arith.truncf %13 : vector<16x1xf32> to vector<16x1xbf16>
    %22 = tpu.transpose %12, [1, 0] : vector<16x1xf32> -> vector<1x16xf32>
    %23 = arith.truncf %22 : vector<1x16xf32> to vector<1x16xbf16>
    %24 = vector.broadcast %21 : vector<16x1xbf16> to vector<16x16xbf16>
    %25 = vector.broadcast %23 : vector<1x16xbf16> to vector<16x16xbf16>
    %26 = arith.addf %24, %25 : vector<16x16xbf16>
    %cst_16 = arith.constant 2.001950e-01 : bf16
    %27 = vector.broadcast %cst_16 : bf16 to vector<16x16xbf16>
    %28 = arith.mulf %27, %26 : vector<16x16xbf16>
    %29 = arith.maximumf %26, %28 : vector<16x16xbf16>
    %30 = arith.truncf %20 : vector<16x1xf32> to vector<16x1xbf16>
    %31 = vector.broadcast %30 : vector<16x1xbf16> to vector<16x16xbf16>
    %32 = arith.subf %29, %31 : vector<16x16xbf16>
    %33 = math.exp %32 : vector<16x16xbf16>
    %34 = arith.mulf %33, %0 : vector<16x16xbf16>
    %35 = arith.truncf %11 : vector<16x16xf32> to vector<16x16xbf16>
    %36 = tpu.concatenate %35, %1 in 1 : vector<16x16xbf16>, vector<16x1xbf16> -> vector<16x17xbf16>
    %cst_17 = arith.constant dense<0.000000e+00> : vector<16x17xf32>
    %37 = tpu.matmul %34, %36, %cst_17 {dimension_numbers = #tpu.dot_dimension_numbers<[1], [0], [0], [1], [0, 0, 1, 1], [], []>} : vector<16x16xbf16>, vector<16x17xbf16>, vector<16x17xf32> -> vector<16x17xf32>
    %38 = vector.extract_strided_slice %37 {offsets = [0, 0], sizes = [16, 16], strides = [1, 1]} : vector<16x17xf32> to vector<16x16xf32>
    %39 = vector.extract_strided_slice %37 {offsets = [0, 16], sizes = [16, 1], strides = [1, 1]} : vector<16x17xf32> to vector<16x1xf32>
    %cst_18 = arith.constant 9.99999996E-13 : f32
    %40 = vector.broadcast %cst_18 : f32 to vector<16x1xf32>
    %41 = arith.maximumf %39, %40 : vector<16x1xf32>
    %42 = tpu.reciprocal %41 {approx = true} : vector<16x1xf32> -> vector<16x1xf32>
    %43 = vector.broadcast %42 : vector<16x1xf32> to vector<16x16xf32>
    %44 = arith.mulf %38, %43 : vector<16x16xf32>
    %45 = vector.broadcast %10 : vector<1x16xf32> to vector<16x16xf32>
    %46 = arith.addf %44, %45 : vector<16x16xf32>
    %cst_19 = arith.constant 0.000000e+00 : f32
    %47 = vector.broadcast %cst_19 : f32 to vector<16x16xf32>
    %48 = arith.maximumf %46, %47 : vector<16x16xf32>
    %49 = vector.extract_strided_slice %7 {offsets = [0, 18], sizes = [16, 18], strides = [1, 1]} : vector<16x36xf32> to vector<16x18xf32>
    %50 = vector.extract_strided_slice %8 {offsets = [0, 16], sizes = [1, 16], strides = [1, 1]} : vector<1x32xf32> to vector<1x16xf32>
    %51 = vector.extract_strided_slice %49 {offsets = [0, 0], sizes = [16, 16], strides = [1, 1]} : vector<16x18xf32> to vector<16x16xf32>
    %52 = vector.extract_strided_slice %49 {offsets = [0, 16], sizes = [16, 1], strides = [1, 1]} : vector<16x18xf32> to vector<16x1xf32>
    %53 = vector.extract_strided_slice %49 {offsets = [0, 17], sizes = [16, 1], strides = [1, 1]} : vector<16x18xf32> to vector<16x1xf32>
    %cst_20 = arith.constant dense<0xFF800000> : vector<1xf32>
    %54 = vector.multi_reduction <maximumf>, %52, %cst_20 [0] : vector<16x1xf32> to vector<1xf32>
    %55 = vector.shape_cast %54 : vector<1xf32> to vector<1x1xf32>
    %56 = vector.broadcast %55 : vector<1x1xf32> to vector<16x1xf32>
    %57 = arith.addf %53, %56 : vector<16x1xf32>
    %cst_21 = arith.constant 2.000000e-01 : f32
    %58 = vector.broadcast %cst_21 : f32 to vector<16x1xf32>
    %59 = arith.mulf %58, %57 : vector<16x1xf32>
    %60 = arith.maximumf %57, %59 : vector<16x1xf32>
    %61 = arith.truncf %53 : vector<16x1xf32> to vector<16x1xbf16>
    %62 = tpu.transpose %52, [1, 0] : vector<16x1xf32> -> vector<1x16xf32>
    %63 = arith.truncf %62 : vector<1x16xf32> to vector<1x16xbf16>
    %64 = vector.broadcast %61 : vector<16x1xbf16> to vector<16x16xbf16>
    %65 = vector.broadcast %63 : vector<1x16xbf16> to vector<16x16xbf16>
    %66 = arith.addf %64, %65 : vector<16x16xbf16>
    %cst_22 = arith.constant 2.001950e-01 : bf16
    %67 = vector.broadcast %cst_22 : bf16 to vector<16x16xbf16>
    %68 = arith.mulf %67, %66 : vector<16x16xbf16>
    %69 = arith.maximumf %66, %68 : vector<16x16xbf16>
    %70 = arith.truncf %60 : vector<16x1xf32> to vector<16x1xbf16>
    %71 = vector.broadcast %70 : vector<16x1xbf16> to vector<16x16xbf16>
    %72 = arith.subf %69, %71 : vector<16x16xbf16>
    %73 = math.exp %72 : vector<16x16xbf16>
    %74 = arith.mulf %73, %0 : vector<16x16xbf16>
    %75 = arith.truncf %51 : vector<16x16xf32> to vector<16x16xbf16>
    %76 = tpu.concatenate %75, %1 in 1 : vector<16x16xbf16>, vector<16x1xbf16> -> vector<16x17xbf16>
    %cst_23 = arith.constant dense<0.000000e+00> : vector<16x17xf32>
    %77 = tpu.matmul %74, %76, %cst_23 {dimension_numbers = #tpu.dot_dimension_numbers<[1], [0], [0], [1], [0, 0, 1, 1], [], []>} : vector<16x16xbf16>, vector<16x17xbf16>, vector<16x17xf32> -> vector<16x17xf32>
    %78 = vector.extract_strided_slice %77 {offsets = [0, 0], sizes = [16, 16], strides = [1, 1]} : vector<16x17xf32> to vector<16x16xf32>
    %79 = vector.extract_strided_slice %77 {offsets = [0, 16], sizes = [16, 1], strides = [1, 1]} : vector<16x17xf32> to vector<16x1xf32>
    %cst_24 = arith.constant 9.99999996E-13 : f32
    %80 = vector.broadcast %cst_24 : f32 to vector<16x1xf32>
    %81 = arith.maximumf %79, %80 : vector<16x1xf32>
    %82 = tpu.reciprocal %81 {approx = true} : vector<16x1xf32> -> vector<16x1xf32>
    %83 = vector.broadcast %82 : vector<16x1xf32> to vector<16x16xf32>
    %84 = arith.mulf %78, %83 : vector<16x16xf32>
    %85 = vector.broadcast %50 : vector<1x16xf32> to vector<16x16xf32>
    %86 = arith.addf %84, %85 : vector<16x16xf32>
    %cst_25 = arith.constant 0.000000e+00 : f32
    %87 = vector.broadcast %cst_25 : f32 to vector<16x16xf32>
    %88 = arith.maximumf %86, %87 : vector<16x16xf32>
    %89 = tpu.concatenate %48, %88 in 1 : vector<16x16xf32>, vector<16x16xf32> -> vector<16x32xf32>
    %90 = arith.truncf %89 : vector<16x32xf32> to vector<16x32xbf16>
    %c0_26 = arith.constant 0 : index
    %c0_27 = arith.constant 0 : index
    %91 = vector.load %arg7[%c0_26, %c0_27] : memref<32x36xbf16, #tpu.memory_space<vmem>>, vector<32x36xbf16>
    %cst_28 = arith.constant dense<0.000000e+00> : vector<16x36xf32>
    %92 = tpu.matmul %90, %91, %cst_28 {dimension_numbers = #tpu.dot_dimension_numbers<[1], [0], [0], [1], [0, 0, 1, 1], [], []>} : vector<16x32xbf16>, vector<32x36xbf16>, vector<16x36xf32> -> vector<16x36xf32>
    %c0_29 = arith.constant 0 : index
    %c0_30 = arith.constant 0 : index
    %93 = vector.load %arg8[%c0_29, %c0_30] : memref<1x32xf32, #tpu.memory_space<vmem>>, vector<1x32xf32>
    %94 = vector.extract_strided_slice %92 {offsets = [0, 0], sizes = [16, 18], strides = [1, 1]} : vector<16x36xf32> to vector<16x18xf32>
    %95 = vector.extract_strided_slice %93 {offsets = [0, 0], sizes = [1, 16], strides = [1, 1]} : vector<1x32xf32> to vector<1x16xf32>
    %96 = vector.extract_strided_slice %94 {offsets = [0, 0], sizes = [16, 16], strides = [1, 1]} : vector<16x18xf32> to vector<16x16xf32>
    %97 = vector.extract_strided_slice %94 {offsets = [0, 16], sizes = [16, 1], strides = [1, 1]} : vector<16x18xf32> to vector<16x1xf32>
    %98 = vector.extract_strided_slice %94 {offsets = [0, 17], sizes = [16, 1], strides = [1, 1]} : vector<16x18xf32> to vector<16x1xf32>
    %cst_31 = arith.constant dense<0xFF800000> : vector<1xf32>
    %99 = vector.multi_reduction <maximumf>, %97, %cst_31 [0] : vector<16x1xf32> to vector<1xf32>
    %100 = vector.shape_cast %99 : vector<1xf32> to vector<1x1xf32>
    %101 = vector.broadcast %100 : vector<1x1xf32> to vector<16x1xf32>
    %102 = arith.addf %98, %101 : vector<16x1xf32>
    %cst_32 = arith.constant 2.000000e-01 : f32
    %103 = vector.broadcast %cst_32 : f32 to vector<16x1xf32>
    %104 = arith.mulf %103, %102 : vector<16x1xf32>
    %105 = arith.maximumf %102, %104 : vector<16x1xf32>
    %106 = arith.truncf %98 : vector<16x1xf32> to vector<16x1xbf16>
    %107 = tpu.transpose %97, [1, 0] : vector<16x1xf32> -> vector<1x16xf32>
    %108 = arith.truncf %107 : vector<1x16xf32> to vector<1x16xbf16>
    %109 = vector.broadcast %106 : vector<16x1xbf16> to vector<16x16xbf16>
    %110 = vector.broadcast %108 : vector<1x16xbf16> to vector<16x16xbf16>
    %111 = arith.addf %109, %110 : vector<16x16xbf16>
    %cst_33 = arith.constant 2.001950e-01 : bf16
    %112 = vector.broadcast %cst_33 : bf16 to vector<16x16xbf16>
    %113 = arith.mulf %112, %111 : vector<16x16xbf16>
    %114 = arith.maximumf %111, %113 : vector<16x16xbf16>
    %115 = arith.truncf %105 : vector<16x1xf32> to vector<16x1xbf16>
    %116 = vector.broadcast %115 : vector<16x1xbf16> to vector<16x16xbf16>
    %117 = arith.subf %114, %116 : vector<16x16xbf16>
    %118 = math.exp %117 : vector<16x16xbf16>
    %119 = arith.mulf %118, %0 : vector<16x16xbf16>
    %120 = arith.truncf %96 : vector<16x16xf32> to vector<16x16xbf16>
    %121 = tpu.concatenate %120, %1 in 1 : vector<16x16xbf16>, vector<16x1xbf16> -> vector<16x17xbf16>
    %cst_34 = arith.constant dense<0.000000e+00> : vector<16x17xf32>
    %122 = tpu.matmul %119, %121, %cst_34 {dimension_numbers = #tpu.dot_dimension_numbers<[1], [0], [0], [1], [0, 0, 1, 1], [], []>} : vector<16x16xbf16>, vector<16x17xbf16>, vector<16x17xf32> -> vector<16x17xf32>
    %123 = vector.extract_strided_slice %122 {offsets = [0, 0], sizes = [16, 16], strides = [1, 1]} : vector<16x17xf32> to vector<16x16xf32>
    %124 = vector.extract_strided_slice %122 {offsets = [0, 16], sizes = [16, 1], strides = [1, 1]} : vector<16x17xf32> to vector<16x1xf32>
    %cst_35 = arith.constant 9.99999996E-13 : f32
    %125 = vector.broadcast %cst_35 : f32 to vector<16x1xf32>
    %126 = arith.maximumf %124, %125 : vector<16x1xf32>
    %127 = tpu.reciprocal %126 {approx = true} : vector<16x1xf32> -> vector<16x1xf32>
    %128 = vector.broadcast %127 : vector<16x1xf32> to vector<16x16xf32>
    %129 = arith.mulf %123, %128 : vector<16x16xf32>
    %130 = vector.broadcast %95 : vector<1x16xf32> to vector<16x16xf32>
    %131 = arith.addf %129, %130 : vector<16x16xf32>
    %cst_36 = arith.constant 0.000000e+00 : f32
    %132 = vector.broadcast %cst_36 : f32 to vector<16x16xf32>
    %133 = arith.maximumf %131, %132 : vector<16x16xf32>
    %134 = vector.extract_strided_slice %92 {offsets = [0, 18], sizes = [16, 18], strides = [1, 1]} : vector<16x36xf32> to vector<16x18xf32>
    %135 = vector.extract_strided_slice %93 {offsets = [0, 16], sizes = [1, 16], strides = [1, 1]} : vector<1x32xf32> to vector<1x16xf32>
    %136 = vector.extract_strided_slice %134 {offsets = [0, 0], sizes = [16, 16], strides = [1, 1]} : vector<16x18xf32> to vector<16x16xf32>
    %137 = vector.extract_strided_slice %134 {offsets = [0, 16], sizes = [16, 1], strides = [1, 1]} : vector<16x18xf32> to vector<16x1xf32>
    %138 = vector.extract_strided_slice %134 {offsets = [0, 17], sizes = [16, 1], strides = [1, 1]} : vector<16x18xf32> to vector<16x1xf32>
    %cst_37 = arith.constant dense<0xFF800000> : vector<1xf32>
    %139 = vector.multi_reduction <maximumf>, %137, %cst_37 [0] : vector<16x1xf32> to vector<1xf32>
    %140 = vector.shape_cast %139 : vector<1xf32> to vector<1x1xf32>
    %141 = vector.broadcast %140 : vector<1x1xf32> to vector<16x1xf32>
    %142 = arith.addf %138, %141 : vector<16x1xf32>
    %cst_38 = arith.constant 2.000000e-01 : f32
    %143 = vector.broadcast %cst_38 : f32 to vector<16x1xf32>
    %144 = arith.mulf %143, %142 : vector<16x1xf32>
    %145 = arith.maximumf %142, %144 : vector<16x1xf32>
    %146 = arith.truncf %138 : vector<16x1xf32> to vector<16x1xbf16>
    %147 = tpu.transpose %137, [1, 0] : vector<16x1xf32> -> vector<1x16xf32>
    %148 = arith.truncf %147 : vector<1x16xf32> to vector<1x16xbf16>
    %149 = vector.broadcast %146 : vector<16x1xbf16> to vector<16x16xbf16>
    %150 = vector.broadcast %148 : vector<1x16xbf16> to vector<16x16xbf16>
    %151 = arith.addf %149, %150 : vector<16x16xbf16>
    %cst_39 = arith.constant 2.001950e-01 : bf16
    %152 = vector.broadcast %cst_39 : bf16 to vector<16x16xbf16>
    %153 = arith.mulf %152, %151 : vector<16x16xbf16>
    %154 = arith.maximumf %151, %153 : vector<16x16xbf16>
    %155 = arith.truncf %145 : vector<16x1xf32> to vector<16x1xbf16>
    %156 = vector.broadcast %155 : vector<16x1xbf16> to vector<16x16xbf16>
    %157 = arith.subf %154, %156 : vector<16x16xbf16>
    %158 = math.exp %157 : vector<16x16xbf16>
    %159 = arith.mulf %158, %0 : vector<16x16xbf16>
    %160 = arith.truncf %136 : vector<16x16xf32> to vector<16x16xbf16>
    %161 = tpu.concatenate %160, %1 in 1 : vector<16x16xbf16>, vector<16x1xbf16> -> vector<16x17xbf16>
    %cst_40 = arith.constant dense<0.000000e+00> : vector<16x17xf32>
    %162 = tpu.matmul %159, %161, %cst_40 {dimension_numbers = #tpu.dot_dimension_numbers<[1], [0], [0], [1], [0, 0, 1, 1], [], []>} : vector<16x16xbf16>, vector<16x17xbf16>, vector<16x17xf32> -> vector<16x17xf32>
    %163 = vector.extract_strided_slice %162 {offsets = [0, 0], sizes = [16, 16], strides = [1, 1]} : vector<16x17xf32> to vector<16x16xf32>
    %164 = vector.extract_strided_slice %162 {offsets = [0, 16], sizes = [16, 1], strides = [1, 1]} : vector<16x17xf32> to vector<16x1xf32>
    %cst_41 = arith.constant 9.99999996E-13 : f32
    %165 = vector.broadcast %cst_41 : f32 to vector<16x1xf32>
    %166 = arith.maximumf %164, %165 : vector<16x1xf32>
    %167 = tpu.reciprocal %166 {approx = true} : vector<16x1xf32> -> vector<16x1xf32>
    %168 = vector.broadcast %167 : vector<16x1xf32> to vector<16x16xf32>
    %169 = arith.mulf %163, %168 : vector<16x16xf32>
    %170 = vector.broadcast %135 : vector<1x16xf32> to vector<16x16xf32>
    %171 = arith.addf %169, %170 : vector<16x16xf32>
    %cst_42 = arith.constant 0.000000e+00 : f32
    %172 = vector.broadcast %cst_42 : f32 to vector<16x16xf32>
    %173 = arith.maximumf %171, %172 : vector<16x16xf32>
    %174 = tpu.concatenate %133, %173 in 1 : vector<16x16xf32>, vector<16x16xf32> -> vector<16x32xf32>
    %175 = arith.truncf %174 : vector<16x32xf32> to vector<16x32xbf16>
    %cst_43 = arith.constant dense<0.000000e+00> : vector<16x32xf32>
    %176 = tpu.matmul %0, %175, %cst_43 {dimension_numbers = #tpu.dot_dimension_numbers<[1], [0], [0], [1], [0, 0, 1, 1], [], []>} : vector<16x16xbf16>, vector<16x32xbf16>, vector<16x32xf32> -> vector<16x32xf32>
    %177 = vector.broadcast %2 : vector<16x1xf32> to vector<16x32xf32>
    %178 = arith.mulf %176, %177 : vector<16x32xf32>
    %179 = tpu.concatenate %89, %174, %178 in 1 : vector<16x32xf32>, vector<16x32xf32>, vector<16x32xf32> -> vector<16x96xf32>
    %180 = arith.truncf %179 : vector<16x96xf32> to vector<16x96xbf16>
    %c0_44 = arith.constant 0 : index
    %c0_45 = arith.constant 0 : index
    %181 = vector.load %arg9[%c0_44, %c0_45] : memref<96x16xbf16, #tpu.memory_space<vmem>>, vector<96x16xbf16>
    %cst_46 = arith.constant dense<0.000000e+00> : vector<16x16xf32>
    %182 = tpu.matmul %180, %181, %cst_46 {dimension_numbers = #tpu.dot_dimension_numbers<[1], [0], [0], [1], [0, 0, 1, 1], [], []>} : vector<16x96xbf16>, vector<96x16xbf16>, vector<16x16xf32> -> vector<16x16xf32>
    %c0_47 = arith.constant 0 : index
    %c0_48 = arith.constant 0 : index
    %183 = vector.load %arg10[%c0_47, %c0_48] : memref<1x16xf32, #tpu.memory_space<vmem>>, vector<1x16xf32>
    %184 = vector.broadcast %183 : vector<1x16xf32> to vector<16x16xf32>
    %185 = arith.addf %182, %184 : vector<16x16xf32>
    %cst_49 = arith.constant 0.000000e+00 : f32
    %186 = vector.broadcast %cst_49 : f32 to vector<16x16xf32>
    %187 = arith.maximumf %185, %186 : vector<16x16xf32>
    %c0_50 = arith.constant 0 : index
    %c0_51 = arith.constant 0 : index
    %188 = vector.load %arg11[%c0_50, %c0_51] : memref<16x16xf32, #tpu.memory_space<vmem>>, vector<16x16xf32>
    %189 = arith.addf %187, %188 : vector<16x16xf32>
    %c0_52 = arith.constant 0 : index
    %c0_53 = arith.constant 0 : index
    %190 = vector.load %arg12[%c0_52, %c0_53] : memref<16x16xbf16, #tpu.memory_space<vmem>>, vector<16x16xbf16>
    %c0_54 = arith.constant 0 : index
    %c0_55 = arith.constant 0 : index
    %191 = vector.load %arg13[%c0_54, %c0_55] : memref<1x16xf32, #tpu.memory_space<vmem>>, vector<1x16xf32>
    %192 = vector.broadcast %4 : vector<16x1xf32> to vector<16x16xf32>
    %193 = arith.mulf %189, %192 : vector<16x16xf32>
    %194 = arith.truncf %193 : vector<16x16xf32> to vector<16x16xbf16>
    %cst_56 = arith.constant dense<0.000000e+00> : vector<16x16xf32>
    %195 = tpu.matmul %0, %194, %cst_56 {dimension_numbers = #tpu.dot_dimension_numbers<[1], [0], [0], [1], [0, 0, 1, 1], [], []>} : vector<16x16xbf16>, vector<16x16xbf16>, vector<16x16xf32> -> vector<16x16xf32>
    %196 = vector.broadcast %3 : vector<16x1xf32> to vector<16x16xf32>
    %197 = arith.mulf %195, %196 : vector<16x16xf32>
    %198 = arith.truncf %197 : vector<16x16xf32> to vector<16x16xbf16>
    %cst_57 = arith.constant dense<0.000000e+00> : vector<16x16xf32>
    %199 = tpu.matmul %198, %190, %cst_57 {dimension_numbers = #tpu.dot_dimension_numbers<[1], [0], [0], [1], [0, 0, 1, 1], [], []>} : vector<16x16xbf16>, vector<16x16xbf16>, vector<16x16xf32> -> vector<16x16xf32>
    %200 = vector.broadcast %191 : vector<1x16xf32> to vector<16x16xf32>
    %201 = arith.addf %199, %200 : vector<16x16xf32>
    %cst_58 = arith.constant 0.000000e+00 : f32
    %202 = vector.broadcast %cst_58 : f32 to vector<16x16xf32>
    %203 = arith.maximumf %201, %202 : vector<16x16xf32>
    %c0_59 = arith.constant 0 : index
    %c0_60 = arith.constant 0 : index
    %204 = vector.load %arg14[%c0_59, %c0_60] : memref<16x128xbf16, #tpu.memory_space<vmem>>, vector<16x128xbf16>
    %c0_61 = arith.constant 0 : index
    %c0_62 = arith.constant 0 : index
    %205 = vector.load %arg15[%c0_61, %c0_62] : memref<1x128xf32, #tpu.memory_space<vmem>>, vector<1x128xf32>
    %206 = vector.broadcast %4 : vector<16x1xf32> to vector<16x16xf32>
    %207 = arith.mulf %203, %206 : vector<16x16xf32>
    %208 = arith.truncf %207 : vector<16x16xf32> to vector<16x16xbf16>
    %cst_63 = arith.constant dense<0.000000e+00> : vector<16x16xf32>
    %209 = tpu.matmul %0, %208, %cst_63 {dimension_numbers = #tpu.dot_dimension_numbers<[1], [0], [0], [1], [0, 0, 1, 1], [], []>} : vector<16x16xbf16>, vector<16x16xbf16>, vector<16x16xf32> -> vector<16x16xf32>
    %210 = vector.broadcast %3 : vector<16x1xf32> to vector<16x16xf32>
    %211 = arith.mulf %209, %210 : vector<16x16xf32>
    %212 = arith.truncf %211 : vector<16x16xf32> to vector<16x16xbf16>
    %cst_64 = arith.constant dense<0.000000e+00> : vector<16x128xf32>
    %213 = tpu.matmul %212, %204, %cst_64 {dimension_numbers = #tpu.dot_dimension_numbers<[1], [0], [0], [1], [0, 0, 1, 1], [], []>} : vector<16x16xbf16>, vector<16x128xbf16>, vector<16x128xf32> -> vector<16x128xf32>
    %214 = vector.broadcast %205 : vector<1x128xf32> to vector<16x128xf32>
    %215 = arith.addf %213, %214 : vector<16x128xf32>
    %c0_65 = arith.constant 0 : index
    %c0_66 = arith.constant 0 : index
    %216 = vector.load %arg16[%c0_65, %c0_66] : memref<16x128xf32, #tpu.memory_space<vmem>>, vector<16x128xf32>
    tpu.vector_store %arg16[%c0_65, %c0_66], %215 {strides = array<i32>} : memref<16x128xf32, #tpu.memory_space<vmem>>, vector<16x128xf32>,
    return
  }
}

</mosaic_0001>

<llo_original>
// kernel: bem_graph_embedding.1
$region0: #{bem_graph_embedding.1}
  #allocation0 [shape = 'u32[]', space=smem, size = 0x4, offset = 0x4, fixed_abs, tag = 'smem constant byte address 0x4 - core index']
  #allocation1 [shape = 'u32[144,128]{1,0:T(1,128)}', space=vmem, size = 0x12000, scoped, tag = 'internal scratch']
  %s0 = inlined_call_operand.vmem [shape: bf16[16,16], index: 0, kind: input, shape index: {}]
  %s1 = inlined_call_operand.vmem [shape: bf16[16,8], index: 1, kind: input, shape index: {}]
  %s2 = inlined_call_operand.vmem [shape: f32[16,1], index: 2, kind: input, shape index: {}]
  %s3 = inlined_call_operand.vmem [shape: f32[16,1], index: 3, kind: input, shape index: {}]
  %s4 = inlined_call_operand.vmem [shape: f32[16,1], index: 4, kind: input, shape index: {}]
  %s5 = inlined_call_operand.vmem [shape: bf16[8,36], index: 5, kind: input, shape index: {}]
  %s6 = inlined_call_operand.vmem [shape: f32[1,32], index: 6, kind: input, shape index: {}]
  %s7 = inlined_call_operand.vmem [shape: bf16[32,36], index: 7, kind: input, shape index: {}]
  %s8 = inlined_call_operand.vmem [shape: f32[1,32], index: 8, kind: input, shape index: {}]
  %s9 = inlined_call_operand.vmem [shape: bf16[96,16], index: 9, kind: input, shape index: {}]
  %s10 = inlined_call_operand.vmem [shape: f32[1,16], index: 10, kind: input, shape index: {}]
  %s11 = inlined_call_operand.vmem [shape: f32[16,16], index: 11, kind: input, shape index: {}]
  %s12 = inlined_call_operand.vmem [shape: bf16[16,16], index: 12, kind: input, shape index: {}]
  %s13 = inlined_call_operand.vmem [shape: f32[1,16], index: 13, kind: input, shape index: {}]
  %s14 = inlined_call_operand.vmem [shape: bf16[16,128], index: 14, kind: input, shape index: {}]
  %s15 = inlined_call_operand.vmem [shape: f32[1,128], index: 15, kind: input, shape index: {}]
  %s16 = inlined_call_operand.vmem [shape: f32[16,128], index: 16, kind: output, shape index: {}]
  %s17 = sld [smem:[#allocation0]]
  $region74: #{bem_graph_embedding.1} parent=0
    _
  %s19 = ssub.s32 1, %s17
  %s20 = scalar_select 0, %s19, %s17
  // Predicated region
  $region2: #{bem_graph_embedding.1} parent=0 // pred_check
    _
  $region3: #{bem_graph_embedding.1} parent=0 // pred_check_branch
    %22 = sbr.rel (0) target = $region5
  $region4: #{bem_graph_embedding.1} parent=0 // pred_region
    _
  $region5: #{bem_graph_embedding.1} parent=0 // pred_fallthru
    _
  // Predicated region
  $region6: #{bem_graph_embedding.1} parent=0 // pred_check
    _
  $region7: #{bem_graph_embedding.1} parent=0 // pred_check_branch
    %24 = sbr.rel (0) target = $region9
  $region8: #{bem_graph_embedding.1} parent=0 // pred_region
    _
  $region9: #{bem_graph_embedding.1} parent=0 // pred_fallthru
    _
  // Predicated region
  $region10: #{bem_graph_embedding.1} parent=0 // pred_check
    _
  $region11: #{bem_graph_embedding.1} parent=0 // pred_check_branch
    %26 = sbr.rel (0) target = $region13
  $region12: #{bem_graph_embedding.1} parent=0 // pred_region
    _
  $region13: #{bem_graph_embedding.1} parent=0 // pred_fallthru
    _
  // Predicated region
  $region14: #{bem_graph_embedding.1} parent=0 // pred_check
    _
  $region15: #{bem_graph_embedding.1} parent=0 // pred_check_branch
    %28 = sbr.rel (0) target = $region17
  $region16: #{bem_graph_embedding.1} parent=0 // pred_region
    _
  $region17: #{bem_graph_embedding.1} parent=0 // pred_fallthru
    _
  // Predicated region
  $region18: #{bem_graph_embedding.1} parent=0 // pred_check
    _
  $region19: #{bem_graph_embedding.1} parent=0 // pred_check_branch
    %30 = sbr.rel (0) target = $region21
  $region20: #{bem_graph_embedding.1} parent=0 // pred_region
    _
  $region21: #{bem_graph_embedding.1} parent=0 // pred_fallthru
    _
  // Predicated region
  $region22: #{bem_graph_embedding.1} parent=0 // pred_check
    _
  $region23: #{bem_graph_embedding.1} parent=0 // pred_check_branch
    %32 = sbr.rel (0) target = $region25
  $region24: #{bem_graph_embedding.1} parent=0 // pred_region
    _
  $region25: #{bem_graph_embedding.1} parent=0 // pred_fallthru
    _
  // Predicated region
  $region26: #{bem_graph_embedding.1} parent=0 // pred_check
    _
  $region27: #{bem_graph_embedding.1} parent=0 // pred_check_branch
    %34 = sbr.rel (0) target = $region29
  $region28: #{bem_graph_embedding.1} parent=0 // pred_region
    _
  $region29: #{bem_graph_embedding.1} parent=0 // pred_fallthru
    _
  // Predicated region
  $region30: #{bem_graph_embedding.1} parent=0 // pred_check
    _
  $region31: #{bem_graph_embedding.1} parent=0 // pred_check_branch
    %36 = sbr.rel (0) target = $region33
  $region32: #{bem_graph_embedding.1} parent=0 // pred_region
    _
  $region33: #{bem_graph_embedding.1} parent=0 // pred_fallthru
    _
  // Predicated region
  $region34: #{bem_graph_embedding.1} parent=0 // pred_check
    _
  $region35: #{bem_graph_embedding.1} parent=0 // pred_check_branch
    %38 = sbr.rel (0) target = $region37
  $region36: #{bem_graph_embedding.1} parent=0 // pred_region
    _
  $region37: #{bem_graph_embedding.1} parent=0 // pred_fallthru
    _
  // Predicated region
  $region38: #{bem_graph_embedding.1} parent=0 // pred_check
    _
  $region39: #{bem_graph_embedding.1} parent=0 // pred_check_branch
    %40 = sbr.rel (0) target = $region41
  $region40: #{bem_graph_embedding.1} parent=0 // pred_region
    _
  $region41: #{bem_graph_embedding.1} parent=0 // pred_fallthru
    _
  // Predicated region
  $region42: #{bem_graph_embedding.1} parent=0 // pred_check
    _
  $region43: #{bem_graph_embedding.1} parent=0 // pred_check_branch
    %42 = sbr.rel (0) target = $region45
  $region44: #{bem_graph_embedding.1} parent=0 // pred_region
    _
  $region45: #{bem_graph_embedding.1} parent=0 // pred_fallthru
    _
  // Predicated region
  $region46: #{bem_graph_embedding.1} parent=0 // pred_check
    _
  $region47: #{bem_graph_embedding.1} parent=0 // pred_check_branch
    %44 = sbr.rel (0) target = $region49
  $region48: #{bem_graph_embedding.1} parent=0 // pred_region
    _
  $region49: #{bem_graph_embedding.1} parent=0 // pred_fallthru
    _
  // Predicated region
  $region50: #{bem_graph_embedding.1} parent=0 // pred_check
    _
  $region51: #{bem_graph_embedding.1} parent=0 // pred_check_branch
    %46 = sbr.rel (0) target = $region53
  $region52: #{bem_graph_embedding.1} parent=0 // pred_region
    _
  $region53: #{bem_graph_embedding.1} parent=0 // pred_fallthru
    _
  // Predicated region
  $region54: #{bem_graph_embedding.1} parent=0 // pred_check
    _
  $region55: #{bem_graph_embedding.1} parent=0 // pred_check_branch
    %48 = sbr.rel (0) target = $region57
  $region56: #{bem_graph_embedding.1} parent=0 // pred_region
    _
  $region57: #{bem_graph_embedding.1} parent=0 // pred_fallthru
    _
  // Predicated region
  $region58: #{bem_graph_embedding.1} parent=0 // pred_check
    _
  $region59: #{bem_graph_embedding.1} parent=0 // pred_check_branch
    %50 = sbr.rel (0) target = $region61
  $region60: #{bem_graph_embedding.1} parent=0 // pred_region
    _
  $region61: #{bem_graph_embedding.1} parent=0 // pred_fallthru
    _
  // Predicated region
  $region62: #{bem_graph_embedding.1} parent=0 // pred_check
    _
  $region63: #{bem_graph_embedding.1} parent=0 // pred_check_branch
    %52 = sbr.rel (0) target = $region65
  $region64: #{bem_graph_embedding.1} parent=0 // pred_region
    _
  $region65: #{bem_graph_embedding.1} parent=0 // pred_fallthru
    _
  %v56 = vld [vmem:[%s0] sm:$0xf]
  %v57 = vld [vmem:[%s0 + $0x4] sm:$0xf]
  %v58 = vld [vmem:[%s2] sm:$0xff]
  %v59 = vld [vmem:[%s2 + $0x8] sm:$0xff]
  %v60 = vld [vmem:[%s3] sm:$0xff]
  %v61 = vld [vmem:[%s3 + $0x8] sm:$0xff]
  %v62 = vld [vmem:[%s4] sm:$0xff]
  %v63 = vld [vmem:[%s4 + $0x8] sm:$0xff]
  %v64 = vld [vmem:[%s1] sm:$0xf]
  %v65 = vld [vmem:[%s1 + $0x4] sm:$0xf]
  %v66 = vld [vmem:[%s5] sm:$0xf]
  %v69 = vunpack.c.l.b16 %v64
  %v70 = vunpack.c.l.b16 %v65
  %v71 = vpack.c.b16 %v70, %v69
  %vm72 = vcmask 64512
  %v74 = vsel %vm72, %v71, 0
  %vm76 = vcmask 1043456
  %v78 = vsel %vm76, %v66, 0
  %80 = vmatprep.subr.bf16.mxu0 0
  %81 = vmatpush1.bf16.msra.mxu0 %v78
  %82 = vmatprep.subr.bf16.mxu0 0
  %83 = vmatpush1.bf16.msra.mxu0 0
  %84 = vmatprep.subr.bf16.mxu0 0
  %85 = vmatpush1.bf16.msra.mxu0 0
  %86 = vmatprep.subr.bf16.mxu0 0
  %87 = vmatpush1.bf16.msra.mxu0 0
  %88 = vmatprep.subr.bf16.mxu0 0
  %89 = vmatpush1.bf16.msra.mxu0 0
  %90 = vmatprep.subr.bf16.mxu0 0
  %91 = vmatpush1.bf16.msra.mxu0 0
  %92 = vmatprep.subr.bf16.mxu0 0
  %93 = vmatpush1.bf16.msra.mxu0 0
  %94 = vmatprep.subr.bf16.mxu0 0
  %95 = vmatpush1.bf16.msra.mxu0 0
  %96 = vmatprep.subr.bf16.mxu0 0
  %97 = vmatpush1.bf16.msra.mxu0 0
  %98 = vmatprep.subr.bf16.mxu0 0
  %99 = vmatpush1.bf16.msra.mxu0 0
  %100 = vmatprep.subr.bf16.mxu0 0
  %101 = vmatpush1.bf16.msra.mxu0 0
  %102 = vmatprep.subr.bf16.mxu0 0
  %103 = vmatpush1.bf16.msra.mxu0 0
  %104 = vmatprep.subr.bf16.mxu0 0
  %105 = vmatpush1.bf16.msra.mxu0 0
  %106 = vmatprep.subr.bf16.mxu0 0
  %107 = vmatpush1.bf16.msra.mxu0 0
  %108 = vmatprep.subr.bf16.mxu0 0
  %109 = vmatpush1.bf16.msra.mxu0 0
  %110 = vmatprep.subr.bf16.mxu0 0
  %111 = vmatpush1.bf16.msra.mxu0 0
  %112 = vmatprep.mubr.bf16.mxu0 0
  %113 = vmatmul.mubr.bf16.gmra.mrb[0].mxu0 %v74
  %v114 = vpop.f32.mrb[0].mxu0
  %v115 = vadd.f32 0.0, %v114
  %v116 = vpop.f32.mrb[0].mxu0
  %v117 = vpop.f32.mrb[0].mxu0
  %v118 = vadd.f32 0.0, %v117
  %v119 = vpop.f32.mrb[0].mxu0
  %120 = vdwg.mxu0
  %v121 = vld [vmem:[%s6] sm:$0x1]
  %vm122 = vcmask 138368
  %v123 = vsel %vm122, %v115, -inf
  %v124 = vsel %vm122, %v118, -inf
  %v125 = vmax.f32 %v123, %v124
  %v126 = vrot.slane %v125, 4
  %v127 = vmax.f32 %v125, %v126
  %v128 = vrot.slane %v127, 2
  %v129 = vmax.f32 %v127, %v128
  %v130 = vrot.slane %v129, 1
  %v131 = vmax.f32 %v129, %v130
  %133 = vrot.lane.b32.xlu0 %v131, 1
  %v134 = vpop.permute.xlu0 %133
  %v136 = vadd.f32 %v115, %v134
  %v137 = vadd.f32 %v118, %v134
  %v138 = vmul.f32 %v136, 0.2
  %v139 = vmul.f32 %v137, 0.2
  %v140 = vmax.f32 %v136, %v138
  %v141 = vmax.f32 %v137, %v139
  %v142 = vpack.c.bf16 %v118, %v115
  %145 = vrot.lane.b32.xlu0 %v115, 112
  %v146 = vpop.permute.xlu0 %145
  %147 = vrot.lane.b32.xlu0 %v118, 112
  %v148 = vpop.permute.xlu0 %147
  %151 = vxpose.xlu0.b32.start [1/16] %v146, 128
  %152 = vxpose.xlu0.b32.cont [2/16] %v148, 128
  %153 = vxpose.xlu0.b32.cont [3/16] 0.0, 128
  %154 = vxpose.xlu0.b32.cont [4/16] 0.0, 128
  %155 = vxpose.xlu0.b32.cont [5/16] 0.0, 128
  %156 = vxpose.xlu0.b32.cont [6/16] 0.0, 128
  %157 = vxpose.xlu0.b32.cont [7/16] 0.0, 128
  %158 = vxpose.xlu0.b32.cont [8/16] 0.0, 128
  %159 = vxpose.xlu0.b32.cont [9/16] 0.0, 128
  %160 = vxpose.xlu0.b32.cont [10/16] 0.0, 128
  %161 = vxpose.xlu0.b32.cont [11/16] 0.0, 128
  %162 = vxpose.xlu0.b32.cont [12/16] 0.0, 128
  %163 = vxpose.xlu0.b32.cont [13/16] 0.0, 128
  %164 = vxpose.xlu0.b32.cont [14/16] 0.0, 128
  %165 = vxpose.xlu0.b32.cont [15/16] 0.0, 128
  %166 = vxpose.xlu0.b32.end [16/16] 0.0, 128
  %v167 = vpop.trf.xlu0
  %v168 = vpop.trf.xlu0
  %v169 = vpop.trf.xlu0
  %v170 = vpop.trf.xlu0
  %v171 = vpop.trf.xlu0
  %v172 = vpop.trf.xlu0
  %v173 = vpop.trf.xlu0
  %v174 = vpop.trf.xlu0
  %v175 = vpop.trf.xlu0
  %v176 = vpop.trf.xlu0
  %v177 = vpop.trf.xlu0
  %v178 = vpop.trf.xlu0
  %v179 = vpop.trf.xlu0
  %v180 = vpop.trf.xlu0
  %v181 = vpop.trf.xlu0
  %v182 = vpop.trf.xlu0
  %v183 = vpack.c.bf16 %v167, %v167
  %185 = vset.pattern.permute.xlu0 17
  %186 = vperm.xlu0 %185, %v142
  %v187 = vpop.permute.xlu0 %186
  %v190 = vpack.i.b16 %v183, %v183
  %v192 = vlaneseq
  %v193 = vshrl.u32 %v192, 7
  %v194 = vsub.s32 0, %v193
  %v195 = vrot.slane %v190, %v194
  %v196 = vadd.bf16 %v187, %v195
  %v197 = vmul.bf16 %v196, 1045249613
  %v198 = vmax.bf16 %v196, %v197
  %v199 = vpack.c.bf16 %v141, %v140
  %201 = vset.pattern.permute.xlu0 17
  %202 = vperm.xlu0 %201, %v199
  %v203 = vpop.permute.xlu0 %202
  %v205 = vsub.bf16 %v198, %v203
  %v207 = vmul.bf16 %v205, 1069105081
  %v208 = vpow.bf16.pop %v207
  %v211 = vunpack.c.l.b16 %v56
  %v212 = vunpack.c.l.b16 %v57
  %v213 = vpack.c.b16 %v212, %v211
  %v215 = vmul.bf16 %v208, %v213
  %vm216 = vcmask 130048
  %v218 = vsel %vm216, %v142, 1065369472
  %v221 = vsel %vm216, %v215, 0
  %223 = vmatprep.subr.bf16.mxu0 0
  %224 = vmatpush1.bf16.msra.mxu0 %v218
  %225 = vmatprep.subr.bf16.mxu0 0
  %226 = vmatpush1.bf16.msra.mxu0 0
  %227 = vmatprep.subr.bf16.mxu0 0
  %228 = vmatpush1.bf16.msra.mxu0 0
  %229 = vmatprep.subr.bf16.mxu0 0
  %230 = vmatpush1.bf16.msra.mxu0 0
  %231 = vmatprep.subr.bf16.mxu0 0
  %232 = vmatpush1.bf16.msra.mxu0 0
  %233 = vmatprep.subr.bf16.mxu0 0
  %234 = vmatpush1.bf16.msra.mxu0 0
  %235 = vmatprep.subr.bf16.mxu0 0
  %236 = vmatpush1.bf16.msra.mxu0 0
  %237 = vmatprep.subr.bf16.mxu0 0
  %238 = vmatpush1.bf16.msra.mxu0 0
  %239 = vmatprep.subr.bf16.mxu0 0
  %240 = vmatpush1.bf16.msra.mxu0 0
  %241 = vmatprep.subr.bf16.mxu0 0
  %242 = vmatpush1.bf16.msra.mxu0 0
  %243 = vmatprep.subr.bf16.mxu0 0
  %244 = vmatpush1.bf16.msra.mxu0 0
  %245 = vmatprep.subr.bf16.mxu0 0
  %246 = vmatpush1.bf16.msra.mxu0 0
  %247 = vmatprep.subr.bf16.mxu0 0
  %248 = vmatpush1.bf16.msra.mxu0 0
  %249 = vmatprep.subr.bf16.mxu0 0
  %250 = vmatpush1.bf16.msra.mxu0 0
  %251 = vmatprep.subr.bf16.mxu0 0
  %252 = vmatpush1.bf16.msra.mxu0 0
  %253 = vmatprep.subr.bf16.mxu0 0
  %254 = vmatpush1.bf16.msra.mxu0 0
  %255 = vmatprep.mubr.bf16.mxu0 0
  %256 = vmatmul.mubr.bf16.gmra.mrb[0].mxu0 %v221
  %v257 = vpop.f32.mrb[0].mxu0
  %v258 = vadd.f32 0.0, %v257
  %v259 = vpop.f32.mrb[0].mxu0
  %v260 = vpop.f32.mrb[0].mxu0
  %v261 = vadd.f32 0.0, %v260
  %v262 = vpop.f32.mrb[0].mxu0
  %263 = vdwg.mxu0
  %v264 = vmax.f32 %v258, 1e-12
  %v265 = vmax.f32 %v261, 1e-12
  %v266 = vrcp.pop %v264
  %v267 = vrcp.pop %v265
  %269 = vset.pattern.permute.xlu0 16
  %270 = vperm.xlu0 %269, %v266
  %v271 = vpop.permute.xlu0 %270
  %274 = vset.pattern.permute.xlu0 16
  %275 = vperm.xlu0 %274, %v267
  %v276 = vpop.permute.xlu0 %275
  %v278 = vmul.f32 %v258, %v271
  %v279 = vmul.f32 %v261, %v276
  %v281 = vlaneseq
  %v282 = vshrl.u32 %v281, 7
  %v283 = vsub.s32 0, %v282
  %v284 = vrot.slane %v121, %v283
  %v286 = vadd.f32 %v278, %v284
  %v287 = vadd.f32 %v279, %v284
  %v288 = vmax.f32 %v286, 0.0
  %v289 = vmax.f32 %v287, 0.0
  %vm290 = vcmask 285968
  %v291 = vsel %vm290, %v115, -inf
  %v292 = vsel %vm290, %v118, -inf
  %v293 = vmax.f32 %v291, %v292
  %v294 = vrot.slane %v293, 4
  %v295 = vmax.f32 %v293, %v294
  %v296 = vrot.slane %v295, 2
  %v297 = vmax.f32 %v295, %v296
  %v298 = vrot.slane %v297, 1
  %v299 = vmax.f32 %v297, %v298
  %301 = vrot.lane.b32.xlu0 %v299, 1
  %v302 = vpop.permute.xlu0 %301
  %v304 = vadd.f32 %v115, %v302
  %v305 = vadd.f32 %v118, %v302
  %v306 = vmul.f32 %v304, 0.2
  %v307 = vmul.f32 %v305, 0.2
  %v308 = vmax.f32 %v304, %v306
  %v309 = vmax.f32 %v305, %v307
  %310 = vrot.lane.b32.xlu0 %v115, 94
  %v311 = vpop.permute.xlu0 %310
  %312 = vrot.lane.b32.xlu0 %v118, 94
  %v313 = vpop.permute.xlu0 %312
  %316 = vxpose.xlu0.b32.start [1/16] %v311, 128
  %317 = vxpose.xlu0.b32.cont [2/16] %v313, 128
  %318 = vxpose.xlu0.b32.cont [3/16] 0.0, 128
  %319 = vxpose.xlu0.b32.cont [4/16] 0.0, 128
  %320 = vxpose.xlu0.b32.cont [5/16] 0.0, 128
  %321 = vxpose.xlu0.b32.cont [6/16] 0.0, 128
  %322 = vxpose.xlu0.b32.cont [7/16] 0.0, 128
  %323 = vxpose.xlu0.b32.cont [8/16] 0.0, 128
  %324 = vxpose.xlu0.b32.cont [9/16] 0.0, 128
  %325 = vxpose.xlu0.b32.cont [10/16] 0.0, 128
  %326 = vxpose.xlu0.b32.cont [11/16] 0.0, 128
  %327 = vxpose.xlu0.b32.cont [12/16] 0.0, 128
  %328 = vxpose.xlu0.b32.cont [13/16] 0.0, 128
  %329 = vxpose.xlu0.b32.cont [14/16] 0.0, 128
  %330 = vxpose.xlu0.b32.cont [15/16] 0.0, 128
  %331 = vxpose.xlu0.b32.end [16/16] 0.0, 128
  %v332 = vpop.trf.xlu0
  %v333 = vpop.trf.xlu0
  %v334 = vpop.trf.xlu0
  %v335 = vpop.trf.xlu0
  %v336 = vpop.trf.xlu0
  %v337 = vpop.trf.xlu0
  %v338 = vpop.trf.xlu0
  %v339 = vpop.trf.xlu0
  %v340 = vpop.trf.xlu0
  %v341 = vpop.trf.xlu0
  %v342 = vpop.trf.xlu0
  %v343 = vpop.trf.xlu0
  %v344 = vpop.trf.xlu0
  %v345 = vpop.trf.xlu0
  %v346 = vpop.trf.xlu0
  %v347 = vpop.trf.xlu0
  %v348 = vpack.c.bf16 %v332, %v332
  %349 = vset.pattern.permute.xlu0 35
  %350 = vperm.xlu0 %349, %v142
  %v351 = vpop.permute.xlu0 %350
  %v354 = vpack.i.b16 %v348, %v348
  %v356 = vlaneseq
  %v357 = vshrl.u32 %v356, 7
  %v358 = vsub.s32 0, %v357
  %v359 = vrot.slane %v354, %v358
  %v360 = vadd.bf16 %v351, %v359
  %v361 = vmul.bf16 %v360, 1045249613
  %v362 = vmax.bf16 %v360, %v361
  %v363 = vpack.c.bf16 %v309, %v308
  %365 = vset.pattern.permute.xlu0 35
  %366 = vperm.xlu0 %365, %v363
  %v367 = vpop.permute.xlu0 %366
  %v369 = vsub.bf16 %v362, %v367
  %v371 = vmul.bf16 %v369, 1069105081
  %v372 = vpow.bf16.pop %v371
  %v373 = vmul.bf16 %v372, %v213
  %375 = vrot.lane.b32.xlu0 %v142, 110
  %v376 = vpop.permute.xlu0 %375
  %v378 = vsel %vm216, %v376, 1065369472
  %v381 = vsel %vm216, %v373, 0
  %383 = vmatprep.subr.bf16.mxu0 0
  %384 = vmatpush1.bf16.msra.mxu0 %v378
  %385 = vmatprep.subr.bf16.mxu0 0
  %386 = vmatpush1.bf16.msra.mxu0 0
  %387 = vmatprep.subr.bf16.mxu0 0
  %388 = vmatpush1.bf16.msra.mxu0 0
  %389 = vmatprep.subr.bf16.mxu0 0
  %390 = vmatpush1.bf16.msra.mxu0 0
  %391 = vmatprep.subr.bf16.mxu0 0
  %392 = vmatpush1.bf16.msra.mxu0 0
  %393 = vmatprep.subr.bf16.mxu0 0
  %394 = vmatpush1.bf16.msra.mxu0 0
  %395 = vmatprep.subr.bf16.mxu0 0
  %396 = vmatpush1.bf16.msra.mxu0 0
  %397 = vmatprep.subr.bf16.mxu0 0
  %398 = vmatpush1.bf16.msra.mxu0 0
  %399 = vmatprep.subr.bf16.mxu0 0
  %400 = vmatpush1.bf16.msra.mxu0 0
  %401 = vmatprep.subr.bf16.mxu0 0
  %402 = vmatpush1.bf16.msra.mxu0 0
  %403 = vmatprep.subr.bf16.mxu0 0
  %404 = vmatpush1.bf16.msra.mxu0 0
  %405 = vmatprep.subr.bf16.mxu0 0
  %406 = vmatpush1.bf16.msra.mxu0 0
  %407 = vmatprep.subr.bf16.mxu0 0
  %408 = vmatpush1.bf16.msra.mxu0 0
  %409 = vmatprep.subr.bf16.mxu0 0
  %410 = vmatpush1.bf16.msra.mxu0 0
  %411 = vmatprep.subr.bf16.mxu0 0
  %412 = vmatpush1.bf16.msra.mxu0 0
  %413 = vmatprep.subr.bf16.mxu0 0
  %414 = vmatpush1.bf16.msra.mxu0 0
  %415 = vmatprep.mubr.bf16.mxu0 0
  %416 = vmatmul.mubr.bf16.gmra.mrb[0].mxu0 %v381
  %v417 = vpop.f32.mrb[0].mxu0
  %v418 = vadd.f32 0.0, %v417
  %v419 = vpop.f32.mrb[0].mxu0
  %v420 = vpop.f32.mrb[0].mxu0
  %v421 = vadd.f32 0.0, %v420
  %v422 = vpop.f32.mrb[0].mxu0
  %423 = vdwg.mxu0
  %v424 = vmax.f32 %v418, 1e-12
  %v425 = vmax.f32 %v421, 1e-12
  %v426 = vrcp.pop %v424
  %v427 = vrcp.pop %v425
  %429 = vset.pattern.permute.xlu0 16
  %430 = vperm.xlu0 %429, %v426
  %v431 = vpop.permute.xlu0 %430
  %434 = vset.pattern.permute.xlu0 16
  %435 = vperm.xlu0 %434, %v427
  %v436 = vpop.permute.xlu0 %435
  %v438 = vmul.f32 %v418, %v431
  %v439 = vmul.f32 %v421, %v436
  %440 = vrot.lane.b32.xlu0 %v284, 112
  %v441 = vpop.permute.xlu0 %440
  %v443 = vadd.f32 %v438, %v441
  %v444 = vadd.f32 %v439, %v441
  %v445 = vmax.f32 %v443, 0.0
  %v446 = vmax.f32 %v444, 0.0
  %449 = vrot.lane.b32.xlu0 %v445, 16
  %v450 = vpop.permute.xlu0 %449
  %451 = vrot.lane.b32.xlu0 %v446, 16
  %v452 = vpop.permute.xlu0 %451
  %v455 = vsel %vm216, %v288, %v450
  %v456 = vsel %vm216, %v289, %v452
  %v457 = vpack.c.bf16 %v456, %v455
  %v458 = vld [vmem:[%s7] sm:$0xf]
  %v459 = vld [vmem:[%s7 + $0x4] sm:$0xf]
  %v460 = vld [vmem:[%s7 + $0x8] sm:$0xf]
  %v461 = vld [vmem:[%s7 + $0xc] sm:$0xf]
  %v466 = vunpack.c.l.b16 %v458
  %v467 = vunpack.c.l.b16 %v459
  %v468 = vunpack.c.l.b16 %v460
  %v469 = vunpack.c.l.b16 %v461
  %v470 = vpack.c.b16 %v467, %v466
  %v471 = vpack.c.b16 %v469, %v468
  %vm474 = vcmask 261120
  %v476 = vsel %vm474, %v457, 0
  %478 = vmatprep.subr.bf16.mxu0 0
  %479 = vmatpush1.bf16.msra.mxu0 %v470
  %480 = vmatprep.subr.bf16.mxu0 0
  %481 = vmatpush1.bf16.msra.mxu0 %v471
  %482 = vmatprep.subr.bf16.mxu0 0
  %483 = vmatpush1.bf16.msra.mxu0 0
  %484 = vmatprep.subr.bf16.mxu0 0
  %485 = vmatpush1.bf16.msra.mxu0 0
  %486 = vmatprep.subr.bf16.mxu0 0
  %487 = vmatpush1.bf16.msra.mxu0 0
  %488 = vmatprep.subr.bf16.mxu0 0
  %489 = vmatpush1.bf16.msra.mxu0 0
  %490 = vmatprep.subr.bf16.mxu0 0
  %491 = vmatpush1.bf16.msra.mxu0 0
  %492 = vmatprep.subr.bf16.mxu0 0
  %493 = vmatpush1.bf16.msra.mxu0 0
  %494 = vmatprep.subr.bf16.mxu0 0
  %495 = vmatpush1.bf16.msra.mxu0 0
  %496 = vmatprep.subr.bf16.mxu0 0
  %497 = vmatpush1.bf16.msra.mxu0 0
  %498 = vmatprep.subr.bf16.mxu0 0
  %499 = vmatpush1.bf16.msra.mxu0 0
  %500 = vmatprep.subr.bf16.mxu0 0
  %501 = vmatpush1.bf16.msra.mxu0 0
  %502 = vmatprep.subr.bf16.mxu0 0
  %503 = vmatpush1.bf16.msra.mxu0 0
  %504 = vmatprep.subr.bf16.mxu0 0
  %505 = vmatpush1.bf16.msra.mxu0 0
  %506 = vmatprep.subr.bf16.mxu0 0
  %507 = vmatpush1.bf16.msra.mxu0 0
  %508 = vmatprep.subr.bf16.mxu0 0
  %509 = vmatpush1.bf16.msra.mxu0 0
  %510 = vmatprep.mubr.bf16.mxu0 0
  %511 = vmatmul.mubr.bf16.gmra.mrb[0].mxu0 %v476
  %v512 = vpop.f32.mrb[0].mxu0
  %v513 = vadd.f32 0.0, %v512
  %v514 = vpop.f32.mrb[0].mxu0
  %v515 = vpop.f32.mrb[0].mxu0
  %v516 = vadd.f32 0.0, %v515
  %v517 = vpop.f32.mrb[0].mxu0
  %518 = vdwg.mxu0
  %v519 = vld [vmem:[%s8] sm:$0x1]
  %v520 = vsel %vm122, %v513, -inf
  %v521 = vsel %vm122, %v516, -inf
  %v522 = vmax.f32 %v520, %v521
  %v523 = vrot.slane %v522, 4
  %v524 = vmax.f32 %v522, %v523
  %v525 = vrot.slane %v524, 2
  %v526 = vmax.f32 %v524, %v525
  %v527 = vrot.slane %v526, 1
  %v528 = vmax.f32 %v526, %v527
  %530 = vrot.lane.b32.xlu0 %v528, 1
  %v531 = vpop.permute.xlu0 %530
  %v533 = vadd.f32 %v513, %v531
  %v534 = vadd.f32 %v516, %v531
  %v535 = vmul.f32 %v533, 0.2
  %v536 = vmul.f32 %v534, 0.2
  %v537 = vmax.f32 %v533, %v535
  %v538 = vmax.f32 %v534, %v536
  %v539 = vpack.c.bf16 %v516, %v513
  %542 = vrot.lane.b32.xlu0 %v513, 112
  %v543 = vpop.permute.xlu0 %542
  %544 = vrot.lane.b32.xlu0 %v516, 112
  %v545 = vpop.permute.xlu0 %544
  %548 = vxpose.xlu0.b32.start [1/16] %v543, 128
  %549 = vxpose.xlu0.b32.cont [2/16] %v545, 128
  %550 = vxpose.xlu0.b32.cont [3/16] 0.0, 128
  %551 = vxpose.xlu0.b32.cont [4/16] 0.0, 128
  %552 = vxpose.xlu0.b32.cont [5/16] 0.0, 128
  %553 = vxpose.xlu0.b32.cont [6/16] 0.0, 128
  %554 = vxpose.xlu0.b32.cont [7/16] 0.0, 128
  %555 = vxpose.xlu0.b32.cont [8/16] 0.0, 128
  %556 = vxpose.xlu0.b32.cont [9/16] 0.0, 128
  %557 = vxpose.xlu0.b32.cont [10/16] 0.0, 128
  %558 = vxpose.xlu0.b32.cont [11/16] 0.0, 128
  %559 = vxpose.xlu0.b32.cont [12/16] 0.0, 128
  %560 = vxpose.xlu0.b32.cont [13/16] 0.0, 128
  %561 = vxpose.xlu0.b32.cont [14/16] 0.0, 128
  %562 = vxpose.xlu0.b32.cont [15/16] 0.0, 128
  %563 = vxpose.xlu0.b32.end [16/16] 0.0, 128
  %v564 = vpop.trf.xlu0
  %v565 = vpop.trf.xlu0
  %v566 = vpop.trf.xlu0
  %v567 = vpop.trf.xlu0
  %v568 = vpop.trf.xlu0
  %v569 = vpop.trf.xlu0
  %v570 = vpop.trf.xlu0
  %v571 = vpop.trf.xlu0
  %v572 = vpop.trf.xlu0
  %v573 = vpop.trf.xlu0
  %v574 = vpop.trf.xlu0
  %v575 = vpop.trf.xlu0
  %v576 = vpop.trf.xlu0
  %v577 = vpop.trf.xlu0
  %v578 = vpop.trf.xlu0
  %v579 = vpop.trf.xlu0
  %v580 = vpack.c.bf16 %v564, %v564
  %582 = vset.pattern.permute.xlu0 17
  %583 = vperm.xlu0 %582, %v539
  %v584 = vpop.permute.xlu0 %583
  %v587 = vpack.i.b16 %v580, %v580
  %v589 = vlaneseq
  %v590 = vshrl.u32 %v589, 7
  %v591 = vsub.s32 0, %v590
  %v592 = vrot.slane %v587, %v591
  %v593 = vadd.bf16 %v584, %v592
  %v594 = vmul.bf16 %v593, 1045249613
  %v595 = vmax.bf16 %v593, %v594
  %v596 = vpack.c.bf16 %v538, %v537
  %598 = vset.pattern.permute.xlu0 17
  %599 = vperm.xlu0 %598, %v596
  %v600 = vpop.permute.xlu0 %599
  %v602 = vsub.bf16 %v595, %v600
  %v604 = vmul.bf16 %v602, 1069105081
  %v605 = vpow.bf16.pop %v604
  %v606 = vmul.bf16 %v605, %v213
  %v607 = vsel %vm216, %v539, 1065369472
  %v610 = vsel %vm216, %v606, 0
  %612 = vmatprep.subr.bf16.mxu0 0
  %613 = vmatpush1.bf16.msra.mxu0 %v607
  %614 = vmatprep.subr.bf16.mxu0 0
  %615 = vmatpush1.bf16.msra.mxu0 0
  %616 = vmatprep.subr.bf16.mxu0 0
  %617 = vmatpush1.bf16.msra.mxu0 0
  %618 = vmatprep.subr.bf16.mxu0 0
  %619 = vmatpush1.bf16.msra.mxu0 0
  %620 = vmatprep.subr.bf16.mxu0 0
  %621 = vmatpush1.bf16.msra.mxu0 0
  %622 = vmatprep.subr.bf16.mxu0 0
  %623 = vmatpush1.bf16.msra.mxu0 0
  %624 = vmatprep.subr.bf16.mxu0 0
  %625 = vmatpush1.bf16.msra.mxu0 0
  %626 = vmatprep.subr.bf16.mxu0 0
  %627 = vmatpush1.bf16.msra.mxu0 0
  %628 = vmatprep.subr.bf16.mxu0 0
  %629 = vmatpush1.bf16.msra.mxu0 0
  %630 = vmatprep.subr.bf16.mxu0 0
  %631 = vmatpush1.bf16.msra.mxu0 0
  %632 = vmatprep.subr.bf16.mxu0 0
  %633 = vmatpush1.bf16.msra.mxu0 0
  %634 = vmatprep.subr.bf16.mxu0 0
  %635 = vmatpush1.bf16.msra.mxu0 0
  %636 = vmatprep.subr.bf16.mxu0 0
  %637 = vmatpush1.bf16.msra.mxu0 0
  %638 = vmatprep.subr.bf16.mxu0 0
  %639 = vmatpush1.bf16.msra.mxu0 0
  %640 = vmatprep.subr.bf16.mxu0 0
  %641 = vmatpush1.bf16.msra.mxu0 0
  %642 = vmatprep.subr.bf16.mxu0 0
  %643 = vmatpush1.bf16.msra.mxu0 0
  %644 = vmatprep.mubr.bf16.mxu0 0
  %645 = vmatmul.mubr.bf16.gmra.mrb[0].mxu0 %v610
  %v646 = vpop.f32.mrb[0].mxu0
  %v647 = vadd.f32 0.0, %v646
  %v648 = vpop.f32.mrb[0].mxu0
  %v649 = vpop.f32.mrb[0].mxu0
  %v650 = vadd.f32 0.0, %v649
  %v651 = vpop.f32.mrb[0].mxu0
  %652 = vdwg.mxu0
  %v653 = vmax.f32 %v647, 1e-12
  %v654 = vmax.f32 %v650, 1e-12
  %v655 = vrcp.pop %v653
  %v656 = vrcp.pop %v654
  %658 = vset.pattern.permute.xlu0 16
  %659 = vperm.xlu0 %658, %v655
  %v660 = vpop.permute.xlu0 %659
  %663 = vset.pattern.permute.xlu0 16
  %664 = vperm.xlu0 %663, %v656
  %v665 = vpop.permute.xlu0 %664
  %v667 = vmul.f32 %v647, %v660
  %v668 = vmul.f32 %v650, %v665
  %v670 = vlaneseq
  %v671 = vshrl.u32 %v670, 7
  %v672 = vsub.s32 0, %v671
  %v673 = vrot.slane %v519, %v672
  %v675 = vadd.f32 %v667, %v673
  %v676 = vadd.f32 %v668, %v673
  %v677 = vmax.f32 %v675, 0.0
  %v678 = vmax.f32 %v676, 0.0
  %v679 = vsel %vm290, %v513, -inf
  %v680 = vsel %vm290, %v516, -inf
  %v681 = vmax.f32 %v679, %v680
  %v682 = vrot.slane %v681, 4
  %v683 = vmax.f32 %v681, %v682
  %v684 = vrot.slane %v683, 2
  %v685 = vmax.f32 %v683, %v684
  %v686 = vrot.slane %v685, 1
  %v687 = vmax.f32 %v685, %v686
  %689 = vrot.lane.b32.xlu0 %v687, 1
  %v690 = vpop.permute.xlu0 %689
  %v692 = vadd.f32 %v513, %v690
  %v693 = vadd.f32 %v516, %v690
  %v694 = vmul.f32 %v692, 0.2
  %v695 = vmul.f32 %v693, 0.2
  %v696 = vmax.f32 %v692, %v694
  %v697 = vmax.f32 %v693, %v695
  %698 = vrot.lane.b32.xlu0 %v513, 94
  %v699 = vpop.permute.xlu0 %698
  %700 = vrot.lane.b32.xlu0 %v516, 94
  %v701 = vpop.permute.xlu0 %700
  %704 = vxpose.xlu0.b32.start [1/16] %v699, 128
  %705 = vxpose.xlu0.b32.cont [2/16] %v701, 128
  %706 = vxpose.xlu0.b32.cont [3/16] 0.0, 128
  %707 = vxpose.xlu0.b32.cont [4/16] 0.0, 128
  %708 = vxpose.xlu0.b32.cont [5/16] 0.0, 128
  %709 = vxpose.xlu0.b32.cont [6/16] 0.0, 128
  %710 = vxpose.xlu0.b32.cont [7/16] 0.0, 128
  %711 = vxpose.xlu0.b32.cont [8/16] 0.0, 128
  %712 = vxpose.xlu0.b32.cont [9/16] 0.0, 128
  %713 = vxpose.xlu0.b32.cont [10/16] 0.0, 128
  %714 = vxpose.xlu0.b32.cont [11/16] 0.0, 128
  %715 = vxpose.xlu0.b32.cont [12/16] 0.0, 128
  %716 = vxpose.xlu0.b32.cont [13/16] 0.0, 128
  %717 = vxpose.xlu0.b32.cont [14/16] 0.0, 128
  %718 = vxpose.xlu0.b32.cont [15/16] 0.0, 128
  %719 = vxpose.xlu0.b32.end [16/16] 0.0, 128
  %v720 = vpop.trf.xlu0
  %v721 = vpop.trf.xlu0
  %v722 = vpop.trf.xlu0
  %v723 = vpop.trf.xlu0
  %v724 = vpop.trf.xlu0
  %v725 = vpop.trf.xlu0
  %v726 = vpop.trf.xlu0
  %v727 = vpop.trf.xlu0
  %v728 = vpop.trf.xlu0
  %v729 = vpop.trf.xlu0
  %v730 = vpop.trf.xlu0
  %v731 = vpop.trf.xlu0
  %v732 = vpop.trf.xlu0
  %v733 = vpop.trf.xlu0
  %v734 = vpop.trf.xlu0
  %v735 = vpop.trf.xlu0
  %v736 = vpack.c.bf16 %v720, %v720
  %737 = vset.pattern.permute.xlu0 35
  %738 = vperm.xlu0 %737, %v539
  %v739 = vpop.permute.xlu0 %738
  %v742 = vpack.i.b16 %v736, %v736
  %v744 = vlaneseq
  %v745 = vshrl.u32 %v744, 7
  %v746 = vsub.s32 0, %v745
  %v747 = vrot.slane %v742, %v746
  %v748 = vadd.bf16 %v739, %v747
  %v749 = vmul.bf16 %v748, 1045249613
  %v750 = vmax.bf16 %v748, %v749
  %v751 = vpack.c.bf16 %v697, %v696
  %753 = vset.pattern.permute.xlu0 35
  %754 = vperm.xlu0 %753, %v751
  %v755 = vpop.permute.xlu0 %754
  %v757 = vsub.bf16 %v750, %v755
  %v759 = vmul.bf16 %v757, 1069105081
  %v760 = vpow.bf16.pop %v759
  %v761 = vmul.bf16 %v760, %v213
  %763 = vrot.lane.b32.xlu0 %v539, 110
  %v764 = vpop.permute.xlu0 %763
  %v766 = vsel %vm216, %v764, 1065369472
  %v769 = vsel %vm216, %v761, 0
  %771 = vmatprep.subr.bf16.mxu0 0
  %772 = vmatpush1.bf16.msra.mxu0 %v766
  %773 = vmatprep.subr.bf16.mxu0 0
  %774 = vmatpush1.bf16.msra.mxu0 0
  %775 = vmatprep.subr.bf16.mxu0 0
  %776 = vmatpush1.bf16.msra.mxu0 0
  %777 = vmatprep.subr.bf16.mxu0 0
  %778 = vmatpush1.bf16.msra.mxu0 0
  %779 = vmatprep.subr.bf16.mxu0 0
  %780 = vmatpush1.bf16.msra.mxu0 0
  %781 = vmatprep.subr.bf16.mxu0 0
  %782 = vmatpush1.bf16.msra.mxu0 0
  %783 = vmatprep.subr.bf16.mxu0 0
  %784 = vmatpush1.bf16.msra.mxu0 0
  %785 = vmatprep.subr.bf16.mxu0 0
  %786 = vmatpush1.bf16.msra.mxu0 0
  %787 = vmatprep.subr.bf16.mxu0 0
  %788 = vmatpush1.bf16.msra.mxu0 0
  %789 = vmatprep.subr.bf16.mxu0 0
  %790 = vmatpush1.bf16.msra.mxu0 0
  %791 = vmatprep.subr.bf16.mxu0 0
  %792 = vmatpush1.bf16.msra.mxu0 0
  %793 = vmatprep.subr.bf16.mxu0 0
  %794 = vmatpush1.bf16.msra.mxu0 0
  %795 = vmatprep.subr.bf16.mxu0 0
  %796 = vmatpush1.bf16.msra.mxu0 0
  %797 = vmatprep.subr.bf16.mxu0 0
  %798 = vmatpush1.bf16.msra.mxu0 0
  %799 = vmatprep.subr.bf16.mxu0 0
  %800 = vmatpush1.bf16.msra.mxu0 0
  %801 = vmatprep.subr.bf16.mxu0 0
  %802 = vmatpush1.bf16.msra.mxu0 0
  %803 = vmatprep.mubr.bf16.mxu0 0
  %804 = vmatmul.mubr.bf16.gmra.mrb[0].mxu0 %v769
  %v805 = vpop.f32.mrb[0].mxu0
  %v806 = vadd.f32 0.0, %v805
  %v807 = vpop.f32.mrb[0].mxu0
  %v808 = vpop.f32.mrb[0].mxu0
  %v809 = vadd.f32 0.0, %v808
  %v810 = vpop.f32.mrb[0].mxu0
  %811 = vdwg.mxu0
  %v812 = vmax.f32 %v806, 1e-12
  %v813 = vmax.f32 %v809, 1e-12
  %v814 = vrcp.pop %v812
  %v815 = vrcp.pop %v813
  %817 = vset.pattern.permute.xlu0 16
  %818 = vperm.xlu0 %817, %v814
  %v819 = vpop.permute.xlu0 %818
  %822 = vset.pattern.permute.xlu0 16
  %823 = vperm.xlu0 %822, %v815
  %v824 = vpop.permute.xlu0 %823
  %v826 = vmul.f32 %v806, %v819
  %v827 = vmul.f32 %v809, %v824
  %828 = vrot.lane.b32.xlu0 %v673, 112
  %v829 = vpop.permute.xlu0 %828
  %v831 = vadd.f32 %v826, %v829
  %v832 = vadd.f32 %v827, %v829
  %v833 = vmax.f32 %v831, 0.0
  %v834 = vmax.f32 %v832, 0.0
  %837 = vrot.lane.b32.xlu0 %v833, 16
  %v838 = vpop.permute.xlu0 %837
  %839 = vrot.lane.b32.xlu0 %v834, 16
  %v840 = vpop.permute.xlu0 %839
  %v843 = vsel %vm216, %v677, %v838
  %v844 = vsel %vm216, %v678, %v840
  %v845 = vpack.c.bf16 %v844, %v843
  %v847 = vsel %vm216, %v213, 0
  %849 = vmatprep.subr.bf16.mxu0 0
  %850 = vmatpush1.bf16.msra.mxu0 %v845
  %851 = vmatprep.subr.bf16.mxu0 0
  %852 = vmatpush1.bf16.msra.mxu0 0
  %853 = vmatprep.subr.bf16.mxu0 0
  %854 = vmatpush1.bf16.msra.mxu0 0
  %855 = vmatprep.subr.bf16.mxu0 0
  %856 = vmatpush1.bf16.msra.mxu0 0
  %857 = vmatprep.subr.bf16.mxu0 0
  %858 = vmatpush1.bf16.msra.mxu0 0
  %859 = vmatprep.subr.bf16.mxu0 0
  %860 = vmatpush1.bf16.msra.mxu0 0
  %861 = vmatprep.subr.bf16.mxu0 0
  %862 = vmatpush1.bf16.msra.mxu0 0
  %863 = vmatprep.subr.bf16.mxu0 0
  %864 = vmatpush1.bf16.msra.mxu0 0
  %865 = vmatprep.subr.bf16.mxu0 0
  %866 = vmatpush1.bf16.msra.mxu0 0
  %867 = vmatprep.subr.bf16.mxu0 0
  %868 = vmatpush1.bf16.msra.mxu0 0
  %869 = vmatprep.subr.bf16.mxu0 0
  %870 = vmatpush1.bf16.msra.mxu0 0
  %871 = vmatprep.subr.bf16.mxu0 0
  %872 = vmatpush1.bf16.msra.mxu0 0
  %873 = vmatprep.subr.bf16.mxu0 0
  %874 = vmatpush1.bf16.msra.mxu0 0
  %875 = vmatprep.subr.bf16.mxu0 0
  %876 = vmatpush1.bf16.msra.mxu0 0
  %877 = vmatprep.subr.bf16.mxu0 0
  %878 = vmatpush1.bf16.msra.mxu0 0
  %879 = vmatprep.subr.bf16.mxu0 0
  %880 = vmatpush1.bf16.msra.mxu0 0
  %881 = vmatprep.mubr.bf16.mxu0 0
  %882 = vmatmul.mubr.bf16.gmra.mrb[0].mxu0 %v847
  %v883 = vpop.f32.mrb[0].mxu0
  %v884 = vadd.f32 0.0, %v883
  %v885 = vpop.f32.mrb[0].mxu0
  %v886 = vpop.f32.mrb[0].mxu0
  %v887 = vadd.f32 0.0, %v886
  %v888 = vpop.f32.mrb[0].mxu0
  %889 = vdwg.mxu0
  %891 = vset.pattern.permute.xlu0 0
  %892 = vperm.xlu0 %891, %v58
  %v893 = vpop.permute.xlu0 %892
  %896 = vset.pattern.permute.xlu0 0
  %897 = vperm.xlu0 %896, %v59
  %v898 = vpop.permute.xlu0 %897
  %v900 = vmul.f32 %v884, %v893
  %v901 = vmul.f32 %v887, %v898
  %904 = vrot.lane.b32.xlu0 %v843, 32
  %v905 = vpop.permute.xlu0 %904
  %906 = vrot.lane.b32.xlu0 %v844, 32
  %v907 = vpop.permute.xlu0 %906
  %912 = vrot.lane.b32.xlu0 %v900, 64
  %v913 = vpop.permute.xlu0 %912
  %914 = vrot.lane.b32.xlu0 %v901, 64
  %v915 = vpop.permute.xlu0 %914
  %v918 = vsel %vm474, %v455, %v905
  %v919 = vsel %vm474, %v456, %v907
  %vm920 = vcmask 523264
  %v921 = vsel %vm920, %v918, %v913
  %v922 = vsel %vm920, %v919, %v915
  %v923 = vpack.c.bf16 %v922, %v921
  %v924 = vld [vmem:[%s9] sm:$0xf]
  %v925 = vld [vmem:[%s9 + $0x4] sm:$0xf]
  %v926 = vld [vmem:[%s9 + $0x8] sm:$0xf]
  %v927 = vld [vmem:[%s9 + $0xc] sm:$0xf]
  %v928 = vld [vmem:[%s9 + $0x10] sm:$0xf]
  %v929 = vld [vmem:[%s9 + $0x14] sm:$0xf]
  %v930 = vld [vmem:[%s9 + $0x18] sm:$0xf]
  %v931 = vld [vmem:[%s9 + $0x1c] sm:$0xf]
  %v932 = vld [vmem:[%s9 + $0x20] sm:$0xf]
  %v933 = vld [vmem:[%s9 + $0x24] sm:$0xf]
  %v934 = vld [vmem:[%s9 + $0x28] sm:$0xf]
  %v935 = vld [vmem:[%s9 + $0x2c] sm:$0xf]
  %v936 = vld [vmem:[%s10] sm:$0x1]
  %v938 = vlaneseq
  %v939 = vshrl.u32 %v938, 7
  %v940 = vsub.s32 0, %v939
  %v941 = vrot.slane %v936, %v940
  %v955 = vunpack.c.l.b16 %v924
  %v956 = vunpack.c.l.b16 %v925
  %v957 = vunpack.c.l.b16 %v926
  %v958 = vunpack.c.l.b16 %v927
  %v959 = vunpack.c.l.b16 %v928
  %v960 = vunpack.c.l.b16 %v929
  %v961 = vunpack.c.l.b16 %v930
  %v962 = vunpack.c.l.b16 %v931
  %v963 = vunpack.c.l.b16 %v932
  %v964 = vunpack.c.l.b16 %v933
  %v965 = vunpack.c.l.b16 %v934
  %v966 = vunpack.c.l.b16 %v935
  %v967 = vpack.c.b16 %v956, %v955
  %v968 = vpack.c.b16 %v958, %v957
  %v969 = vpack.c.b16 %v960, %v959
  %v970 = vpack.c.b16 %v962, %v961
  %v971 = vpack.c.b16 %v964, %v963
  %v972 = vpack.c.b16 %v966, %v965
  %vm979 = vcmask 785408
  %v981 = vsel %vm979, %v923, 0
  %983 = vmatprep.subr.bf16.mxu0 0
  %984 = vmatpush1.bf16.msra.mxu0 %v967
  %985 = vmatprep.subr.bf16.mxu0 0
  %986 = vmatpush1.bf16.msra.mxu0 %v968
  %987 = vmatprep.subr.bf16.mxu0 0
  %988 = vmatpush1.bf16.msra.mxu0 %v969
  %989 = vmatprep.subr.bf16.mxu0 0
  %990 = vmatpush1.bf16.msra.mxu0 %v970
  %991 = vmatprep.subr.bf16.mxu0 0
  %992 = vmatpush1.bf16.msra.mxu0 %v971
  %993 = vmatprep.subr.bf16.mxu0 0
  %994 = vmatpush1.bf16.msra.mxu0 %v972
  %995 = vmatprep.subr.bf16.mxu0 0
  %996 = vmatpush1.bf16.msra.mxu0 0
  %997 = vmatprep.subr.bf16.mxu0 0
  %998 = vmatpush1.bf16.msra.mxu0 0
  %999 = vmatprep.subr.bf16.mxu0 0
  %1000 = vmatpush1.bf16.msra.mxu0 0
  %1001 = vmatprep.subr.bf16.mxu0 0
  %1002 = vmatpush1.bf16.msra.mxu0 0
  %1003 = vmatprep.subr.bf16.mxu0 0
  %1004 = vmatpush1.bf16.msra.mxu0 0
  %1005 = vmatprep.subr.bf16.mxu0 0
  %1006 = vmatpush1.bf16.msra.mxu0 0
  %1007 = vmatprep.subr.bf16.mxu0 0
  %1008 = vmatpush1.bf16.msra.mxu0 0
  %1009 = vmatprep.subr.bf16.mxu0 0
  %1010 = vmatpush1.bf16.msra.mxu0 0
  %1011 = vmatprep.subr.bf16.mxu0 0
  %1012 = vmatpush1.bf16.msra.mxu0 0
  %1013 = vmatprep.subr.bf16.mxu0 0
  %1014 = vmatpush1.bf16.msra.mxu0 0
  %1015 = vmatprep.mubr.bf16.mxu0 0
  %1016 = vmatmul.mubr.bf16.gmra.mrb[0].mxu0 %v981
  %v1017 = vpop.f32.mrb[0].mxu0
  %v1018 = vadd.f32 %v941, %v1017
  %v1019 = vpop.f32.mrb[0].mxu0
  %v1020 = vpop.f32.mrb[0].mxu0
  %v1021 = vadd.f32 %v941, %v1020
  %v1022 = vpop.f32.mrb[0].mxu0
  %1023 = vdwg.mxu0
  %v1024 = vmax.f32 %v1018, 0.0
  %v1025 = vmax.f32 %v1021, 0.0
  %v1026 = vld [vmem:[%s11] sm:$0xff]
  %v1027 = vld [vmem:[%s11 + $0x8] sm:$0xff]
  %v1028 = vadd.f32 %v1024, %v1026
  %v1029 = vadd.f32 %v1025, %v1027
  %v1030 = vld [vmem:[%s12] sm:$0xf]
  %v1031 = vld [vmem:[%s12 + $0x4] sm:$0xf]
  %v1032 = vld [vmem:[%s13] sm:$0x1]
  %1034 = vset.pattern.permute.xlu0 0
  %1035 = vperm.xlu0 %1034, %v62
  %v1036 = vpop.permute.xlu0 %1035
  %1039 = vset.pattern.permute.xlu0 0
  %1040 = vperm.xlu0 %1039, %v63
  %v1041 = vpop.permute.xlu0 %1040
  %v1043 = vmul.f32 %v1028, %v1036
  %v1044 = vmul.f32 %v1029, %v1041
  %v1045 = vpack.c.bf16 %v1044, %v1043
  %1046 = vmatprep.subr.bf16.mxu0 0
  %1047 = vmatpush1.bf16.msra.mxu0 %v1045
  %1048 = vmatprep.subr.bf16.mxu0 0
  %1049 = vmatpush1.bf16.msra.mxu0 0
  %1050 = vmatprep.subr.bf16.mxu0 0
  %1051 = vmatpush1.bf16.msra.mxu0 0
  %1052 = vmatprep.subr.bf16.mxu0 0
  %1053 = vmatpush1.bf16.msra.mxu0 0
  %1054 = vmatprep.subr.bf16.mxu0 0
  %1055 = vmatpush1.bf16.msra.mxu0 0
  %1056 = vmatprep.subr.bf16.mxu0 0
  %1057 = vmatpush1.bf16.msra.mxu0 0
  %1058 = vmatprep.subr.bf16.mxu0 0
  %1059 = vmatpush1.bf16.msra.mxu0 0
  %1060 = vmatprep.subr.bf16.mxu0 0
  %1061 = vmatpush1.bf16.msra.mxu0 0
  %1062 = vmatprep.subr.bf16.mxu0 0
  %1063 = vmatpush1.bf16.msra.mxu0 0
  %1064 = vmatprep.subr.bf16.mxu0 0
  %1065 = vmatpush1.bf16.msra.mxu0 0
  %1066 = vmatprep.subr.bf16.mxu0 0
  %1067 = vmatpush1.bf16.msra.mxu0 0
  %1068 = vmatprep.subr.bf16.mxu0 0
  %1069 = vmatpush1.bf16.msra.mxu0 0
  %1070 = vmatprep.subr.bf16.mxu0 0
  %1071 = vmatpush1.bf16.msra.mxu0 0
  %1072 = vmatprep.subr.bf16.mxu0 0
  %1073 = vmatpush1.bf16.msra.mxu0 0
  %1074 = vmatprep.subr.bf16.mxu0 0
  %1075 = vmatpush1.bf16.msra.mxu0 0
  %1076 = vmatprep.subr.bf16.mxu0 0
  %1077 = vmatpush1.bf16.msra.mxu0 0
  %1078 = vmatprep.mubr.bf16.mxu0 0
  %1079 = vmatmul.mubr.bf16.gmra.mrb[0].mxu0 %v847
  %v1080 = vpop.f32.mrb[0].mxu0
  %v1081 = vadd.f32 0.0, %v1080
  %v1082 = vpop.f32.mrb[0].mxu0
  %v1083 = vpop.f32.mrb[0].mxu0
  %v1084 = vadd.f32 0.0, %v1083
  %v1085 = vpop.f32.mrb[0].mxu0
  %1086 = vdwg.mxu0
  %1088 = vset.pattern.permute.xlu0 0
  %1089 = vperm.xlu0 %1088, %v60
  %v1090 = vpop.permute.xlu0 %1089
  %1093 = vset.pattern.permute.xlu0 0
  %1094 = vperm.xlu0 %1093, %v61
  %v1095 = vpop.permute.xlu0 %1094
  %v1097 = vmul.f32 %v1081, %v1090
  %v1098 = vmul.f32 %v1084, %v1095
  %v1099 = vpack.c.bf16 %v1098, %v1097
  %v1101 = vlaneseq
  %v1102 = vshrl.u32 %v1101, 7
  %v1103 = vsub.s32 0, %v1102
  %v1104 = vrot.slane %v1032, %v1103
  %v1108 = vunpack.c.l.b16 %v1030
  %v1109 = vunpack.c.l.b16 %v1031
  %v1110 = vpack.c.b16 %v1109, %v1108
  %v1113 = vsel %vm216, %v1099, 0
  %1115 = vmatprep.subr.bf16.mxu0 0
  %1116 = vmatpush1.bf16.msra.mxu0 %v1110
  %1117 = vmatprep.subr.bf16.mxu0 0
  %1118 = vmatpush1.bf16.msra.mxu0 0
  %1119 = vmatprep.subr.bf16.mxu0 0
  %1120 = vmatpush1.bf16.msra.mxu0 0
  %1121 = vmatprep.subr.bf16.mxu0 0
  %1122 = vmatpush1.bf16.msra.mxu0 0
  %1123 = vmatprep.subr.bf16.mxu0 0
  %1124 = vmatpush1.bf16.msra.mxu0 0
  %1125 = vmatprep.subr.bf16.mxu0 0
  %1126 = vmatpush1.bf16.msra.mxu0 0
  %1127 = vmatprep.subr.bf16.mxu0 0
  %1128 = vmatpush1.bf16.msra.mxu0 0
  %1129 = vmatprep.subr.bf16.mxu0 0
  %1130 = vmatpush1.bf16.msra.mxu0 0
  %1131 = vmatprep.subr.bf16.mxu0 0
  %1132 = vmatpush1.bf16.msra.mxu0 0
  %1133 = vmatprep.subr.bf16.mxu0 0
  %1134 = vmatpush1.bf16.msra.mxu0 0
  %1135 = vmatprep.subr.bf16.mxu0 0
  %1136 = vmatpush1.bf16.msra.mxu0 0
  %1137 = vmatprep.subr.bf16.mxu0 0
  %1138 = vmatpush1.bf16.msra.mxu0 0
  %1139 = vmatprep.subr.bf16.mxu0 0
  %1140 = vmatpush1.bf16.msra.mxu0 0
  %1141 = vmatprep.subr.bf16.mxu0 0
  %1142 = vmatpush1.bf16.msra.mxu0 0
  %1143 = vmatprep.subr.bf16.mxu0 0
  %1144 = vmatpush1.bf16.msra.mxu0 0
  %1145 = vmatprep.subr.bf16.mxu0 0
  %1146 = vmatpush1.bf16.msra.mxu0 0
  %1147 = vmatprep.mubr.bf16.mxu0 0
  %1148 = vmatmul.mubr.bf16.gmra.mrb[0].mxu0 %v1113
  %v1149 = vpop.f32.mrb[0].mxu0
  %v1150 = vadd.f32 %v1104, %v1149
  %v1151 = vpop.f32.mrb[0].mxu0
  %v1152 = vpop.f32.mrb[0].mxu0
  %v1153 = vadd.f32 %v1104, %v1152
  %v1154 = vpop.f32.mrb[0].mxu0
  %1155 = vdwg.mxu0
  %v1156 = vmax.f32 %v1150, 0.0
  %v1157 = vmax.f32 %v1153, 0.0
  %v1158 = vld [vmem:[%s14] sm:$0xf]
  %v1159 = vld [vmem:[%s14 + $0x4] sm:$0xf]
  %v1160 = vld [vmem:[%s15] sm:$0x1]
  %v1161 = vmul.f32 %v1156, %v1036
  %v1162 = vmul.f32 %v1157, %v1041
  %v1163 = vpack.c.bf16 %v1162, %v1161
  %1164 = vmatprep.subr.bf16.mxu0 0
  %1165 = vmatpush1.bf16.msra.mxu0 %v1163
  %1166 = vmatprep.subr.bf16.mxu0 0
  %1167 = vmatpush1.bf16.msra.mxu0 0
  %1168 = vmatprep.subr.bf16.mxu0 0
  %1169 = vmatpush1.bf16.msra.mxu0 0
  %1170 = vmatprep.subr.bf16.mxu0 0
  %1171 = vmatpush1.bf16.msra.mxu0 0
  %1172 = vmatprep.subr.bf16.mxu0 0
  %1173 = vmatpush1.bf16.msra.mxu0 0
  %1174 = vmatprep.subr.bf16.mxu0 0
  %1175 = vmatpush1.bf16.msra.mxu0 0
  %1176 = vmatprep.subr.bf16.mxu0 0
  %1177 = vmatpush1.bf16.msra.mxu0 0
  %1178 = vmatprep.subr.bf16.mxu0 0
  %1179 = vmatpush1.bf16.msra.mxu0 0
  %1180 = vmatprep.subr.bf16.mxu0 0
  %1181 = vmatpush1.bf16.msra.mxu0 0
  %1182 = vmatprep.subr.bf16.mxu0 0
  %1183 = vmatpush1.bf16.msra.mxu0 0
  %1184 = vmatprep.subr.bf16.mxu0 0
  %1185 = vmatpush1.bf16.msra.mxu0 0
  %1186 = vmatprep.subr.bf16.mxu0 0
  %1187 = vmatpush1.bf16.msra.mxu0 0
  %1188 = vmatprep.subr.bf16.mxu0 0
  %1189 = vmatpush1.bf16.msra.mxu0 0
  %1190 = vmatprep.subr.bf16.mxu0 0
  %1191 = vmatpush1.bf16.msra.mxu0 0
  %1192 = vmatprep.subr.bf16.mxu0 0
  %1193 = vmatpush1.bf16.msra.mxu0 0
  %1194 = vmatprep.subr.bf16.mxu0 0
  %1195 = vmatpush1.bf16.msra.mxu0 0
  %1196 = vmatprep.mubr.bf16.mxu0 0
  %1197 = vmatmul.mubr.bf16.gmra.mrb[0].mxu0 %v847
  %v1198 = vpop.f32.mrb[0].mxu0
  %v1199 = vadd.f32 0.0, %v1198
  %v1200 = vpop.f32.mrb[0].mxu0
  %v1201 = vpop.f32.mrb[0].mxu0
  %v1202 = vadd.f32 0.0, %v1201
  %v1203 = vpop.f32.mrb[0].mxu0
  %1204 = vdwg.mxu0
  %v1205 = vmul.f32 %v1199, %v1090
  %v1206 = vmul.f32 %v1202, %v1095
  %v1207 = vpack.c.bf16 %v1206, %v1205
  %v1209 = vlaneseq
  %v1210 = vshrl.u32 %v1209, 7
  %v1211 = vsub.s32 0, %v1210
  %v1212 = vrot.slane %v1160, %v1211
  %v1216 = vunpack.c.l.b16 %v1158
  %v1217 = vunpack.c.l.b16 %v1159
  %v1218 = vpack.c.b16 %v1217, %v1216
  %v1221 = vsel %vm216, %v1207, 0
  %1223 = vmatprep.subr.bf16.mxu0 0
  %1224 = vmatpush1.bf16.msra.mxu0 %v1218
  %1225 = vmatprep.subr.bf16.mxu0 0
  %1226 = vmatpush1.bf16.msra.mxu0 0
  %1227 = vmatprep.subr.bf16.mxu0 0
  %1228 = vmatpush1.bf16.msra.mxu0 0
  %1229 = vmatprep.subr.bf16.mxu0 0
  %1230 = vmatpush1.bf16.msra.mxu0 0
  %1231 = vmatprep.subr.bf16.mxu0 0
  %1232 = vmatpush1.bf16.msra.mxu0 0
  %1233 = vmatprep.subr.bf16.mxu0 0
  %1234 = vmatpush1.bf16.msra.mxu0 0
  %1235 = vmatprep.subr.bf16.mxu0 0
  %1236 = vmatpush1.bf16.msra.mxu0 0
  %1237 = vmatprep.subr.bf16.mxu0 0
  %1238 = vmatpush1.bf16.msra.mxu0 0
  %1239 = vmatprep.subr.bf16.mxu0 0
  %1240 = vmatpush1.bf16.msra.mxu0 0
  %1241 = vmatprep.subr.bf16.mxu0 0
  %1242 = vmatpush1.bf16.msra.mxu0 0
  %1243 = vmatprep.subr.bf16.mxu0 0
  %1244 = vmatpush1.bf16.msra.mxu0 0
  %1245 = vmatprep.subr.bf16.mxu0 0
  %1246 = vmatpush1.bf16.msra.mxu0 0
  %1247 = vmatprep.subr.bf16.mxu0 0
  %1248 = vmatpush1.bf16.msra.mxu0 0
  %1249 = vmatprep.subr.bf16.mxu0 0
  %1250 = vmatpush1.bf16.msra.mxu0 0
  %1251 = vmatprep.subr.bf16.mxu0 0
  %1252 = vmatpush1.bf16.msra.mxu0 0
  %1253 = vmatprep.subr.bf16.mxu0 0
  %1254 = vmatpush1.bf16.msra.mxu0 0
  %1255 = vmatprep.mubr.bf16.mxu0 0
  %1256 = vmatmul.mubr.bf16.gmra.mrb[0].mxu0 %v1221
  %v1257 = vpop.f32.mrb[0].mxu0
  %v1258 = vadd.f32 %v1212, %v1257
  %v1259 = vpop.f32.mrb[0].mxu0
  %v1260 = vpop.f32.mrb[0].mxu0
  %v1261 = vadd.f32 %v1212, %v1260
  %v1262 = vpop.f32.mrb[0].mxu0
  %1263 = vdwg.mxu0
  %1264 = vst [vmem:[%s16] sm:$0xff] %v1258
  %1265 = vst [vmem:[%s16 + $0x8] sm:$0xff] %v1261
  // Predicated region
  $region66: #{bem_graph_embedding.1} parent=0 // pred_check
    _
  $region67: #{bem_graph_embedding.1} parent=0 // pred_check_branch
    %1267 = sbr.rel (0) target = $region69
  $region68: #{bem_graph_embedding.1} parent=0 // pred_region
    _
  $region69: #{bem_graph_embedding.1} parent=0 // pred_fallthru
    _
  // Predicated region
  $region70: #{bem_graph_embedding.1} parent=0 // pred_check
    _
  $region71: #{bem_graph_embedding.1} parent=0 // pred_check_branch
    %1269 = sbr.rel (0) target = $region73
  $region72: #{bem_graph_embedding.1} parent=0 // pred_region
    _
  $region73: #{bem_graph_embedding.1} parent=0 // pred_fallthru
    _

</llo_original>
